<compile_context>
chip_gen: v7x
topology: tpu7x:2x2x1
jax: 0.10.0
libtpu: 0.0.40
codegen_flags: <defaults>
</compile_context>

<pallas_src>
import jax
import jax.numpy as jnp
from jax.experimental import pallas as pl
from jax.experimental.pallas import tpu as pltpu


def _round_up(x, m):
    return (x + m - 1) // m * m


def _pick_row_chunk(H, W, Wo, max_bytes=4 << 20):
    """Largest divisor R of H whose 4 (R*W, 2*R*Wo) f32 scatter mats fit the cap."""
    best = 1
    for r in range(1, H + 1):
        if H % r == 0 and 4 * (r * W) * (2 * r * Wo) * 4 <= max_bytes:
            best = r
    return best


def _pick_batch_block(N, per_image_io_bytes, max_bytes=8 << 20):
    """Images per grid step: amortize the ~0.35us step overhead, but keep >= 2
    grid steps (v7x has 2 TensorCores) and bound the double-buffered blocks."""
    best = 1
    for nb in range(1, N + 1):
        if N % nb:
            continue
        if N >= 2 and N // nb < 2:
            continue
        if nb * per_image_io_bytes > max_bytes:
            continue
        best = nb
    return best


def _make_decoder_kernel(NB, Cin, Cout, C2, H, W, R, B, L, mxu_dtype):
    Cmid = Cout + C2
    Ho, Wo = 2 * H, 2 * W
    M = Ho * Wo
    n_chunks = H // R
    cw = 2 * R * Wo                      # lanes written per row-chunk
    is_f32 = (mxu_dtype == jnp.float32)
    cast = (lambda v: v) if is_f32 else (lambda v: v.astype(mxu_dtype))

    def kernel(x1_ref, x2_ref, wup_ref, bt4_ref, s_ref, wc_ref, bc_ref, mask_ref,
               o_ref, catflat):
        # ------------------------------------------------------------------
        # 0. zero ONLY the pad lanes the 3x3 conv reads (top/bottom halo of
        #    the flat padded grid); every interior lane is overwritten below.
        #    Unconditional: scratch is per-core under megacore "parallel".
        # ------------------------------------------------------------------
        catflat[:, B - Wo - 1:B] = jnp.zeros((Cmid, Wo + 1), jnp.float32)
        catflat[:, B + M:L] = jnp.zeros((Cmid, Wo + 1), jnp.float32)

        ml = mask_ref[0:1, :]            # 0 where x == 0      (kw == 0 wrap)
        mr = mask_ref[1:2, :]            # 0 where x == Wo - 1 (kw == 2 wrap)
        bc = bc_ref[...]                 # (Cout, 1)

        for n in range(NB):
            # --------------------------------------------------------------
            # 1. ConvTranspose2d(k=2,s=2): all 4 taps in ONE lane-dense matmul,
            #    bias pre-broadcast once (not per row).
            #    up[(a*2+b)*Cout+co, i*W+j] = sum_ci wt[ci,co,a,b]*x1[ci,i,j] + bt[co]
            # --------------------------------------------------------------
            up = jnp.dot(cast(wup_ref[...]), cast(x1_ref[n]),
                         preferred_element_type=jnp.float32) + bt4_ref[...]
            up_c = cast(up)

            # --------------------------------------------------------------
            # 2. interleave the 4 taps into the 2x grid, R input rows per
            #    chunk: 4 scatter matmuls + ONE wide contiguous store.
            # --------------------------------------------------------------
            for c in range(n_chunks):
                src = c * R * W
                acc_rows = None
                for t in range(4):                           # t = a*2 + b
                    blk = up_c[t * Cout:(t + 1) * Cout, src:src + R * W]
                    part = jnp.dot(blk, cast(s_ref[t]),
                                   preferred_element_type=jnp.float32)
                    acc_rows = part if acc_rows is None else acc_rows + part
                dst = B + c * cw
                catflat[0:Cout, dst:dst + cw] = acc_rows

            # --------------------------------------------------------------
            # 3. skip connection: torch.cat([up, x2], dim=1) -> rows [Cout, Cmid)
            #    (Cout should stay a multiple of 8 so this store is sublane-aligned)
            # --------------------------------------------------------------
            catflat[Cout:Cmid, B:B + M] = x2_ref[n]

            # --------------------------------------------------------------
            # 4. Conv2d(3x3, pad=1): 9 accumulating dots straight off the flat
            #    buffer (no im2col materialization).  The column-wrap masks are
            #    applied to the (Cout, M) result of the kw=0 / kw=2 groups.
            # --------------------------------------------------------------
            acc_l = acc_m = acc_r = None
            for kh in range(3):
                row = B - Wo - 1 + kh * Wo
                d_l = jnp.dot(cast(wc_ref[kh * 3 + 0]),
                              cast(catflat[:, row:row + M]),
                              preferred_element_type=jnp.float32)
                d_m = jnp.dot(cast(wc_ref[kh * 3 + 1]),
                              cast(catflat[:, row + 1:row + 1 + M]),
                              preferred_element_type=jnp.float32)
                d_r = jnp.dot(cast(wc_ref[kh * 3 + 2]),
                              cast(catflat[:, row + 2:row + 2 + M]),
                              preferred_element_type=jnp.float32)
                acc_l = d_l if acc_l is None else acc_l + d_l
                acc_m = d_m if acc_m is None else acc_m + d_m
                acc_r = d_r if acc_r is None else acc_r + d_r

            acc = acc_m + ml * acc_l + mr * acc_r + bc
            o_ref[n] = jnp.maximum(acc, 0.0).astype(o_ref.dtype)

    return kernel


def decoder_forward(x1_nchw, x2_nchw, wt, bt, wc, bc, *, mxu_dtype=jnp.float32):
    """x1: (N,Cin,H,W), x2: (N,Cmid-Cout,2H,2W) NCHW; torch-layout params."""
    N, Cin, H, W = x1_nchw.shape
    Nb_, C2, Ho, Wo = x2_nchw.shape
    Cout = wt.shape[1]
    Cmid = wc.shape[1]
    assert Nb_ == N and Ho == 2 * H and Wo == 2 * W and Cmid == Cout + C2
    M = Ho * Wo

    # flat, row-padded concat buffer: 128-lane aligned interior base B
    B = _round_up(Wo + 1, 128)
    L = B + M + Wo + 1
    R = _pick_row_chunk(H, W, Wo)

    per_image_io = (Cin * H * W + C2 * M + Cout * M) * 4 * 2   # double-buffered
    NB = _pick_batch_block(N, per_image_io)

    kernel = _make_decoder_kernel(NB, Cin, Cout, C2, H, W, R, B, L, mxu_dtype)

    # free (metadata-only) reshapes of the NCHW inputs
    x1f = x1_nchw.reshape(N, Cin, H * W)
    x2f = x2_nchw.reshape(N, C2, M)

    # ConvTranspose2d weight (Cin,Cout,2,2) -> (4*Cout, Cin), rows (a*2+b)*Cout+co
    wup = jnp.transpose(wt, (2, 3, 1, 0)).reshape(4 * Cout, Cin).astype(mxu_dtype)
    bt4 = jnp.tile(bt, 4).reshape(4 * Cout, 1)

    # 0/1 chunk scatter matrices: S[a*2+b][r*W + j, r*2*Wo + a*Wo + 2*j + b] = 1
    r_i = jnp.arange(R)[:, None, None]
    j_i = jnp.arange(W)[None, :, None]
    col = jnp.arange(2 * R * Wo)[None, None, :]
    s = jnp.stack(
        [(col == r_i * 2 * Wo + a * Wo + 2 * j_i + b).reshape(R * W, 2 * R * Wo)
         for a in range(2) for b in range(2)], axis=0).astype(mxu_dtype)

    # Conv2d weight (Cout,Cmid,3,3) -> (9, Cout, Cmid) per-tap matrices (kh*3+kw)
    wc9 = jnp.transpose(wc, (2, 3, 0, 1)).reshape(9, Cout, Cmid).astype(mxu_dtype)
    bc2 = bc.reshape(Cout, 1)

    # left/right image-border masks over flat (y*Wo + x) coordinates
    xmod = jnp.arange(M) % Wo
    masks = jnp.stack([(xmod != 0), (xmod != Wo - 1)], axis=0).astype(jnp.float32)

    # VMEM budget: real footprint + margin, capped well below v7x's 64 MiB
    est = (NB * per_image_io
           + 2 * 4 * (wup.size + bt4.size + s.size + wc9.size + bc2.size + masks.size)
           + Cmid * L * 4)
    vmem_limit = int(min(max(2 * est, 32 << 20), 56 << 20))

    out = pl.pallas_call(
        kernel,
        out_shape=jax.ShapeDtypeStruct((N, Cout, M), jnp.float32),
        grid=(N // NB,),
        in_specs=[
            pl.BlockSpec((NB, Cin, H * W), lambda n: (n, 0, 0)),
            pl.BlockSpec((NB, C2, M), lambda n: (n, 0, 0)),
            pl.BlockSpec((4 * Cout, Cin), lambda n: (0, 0)),
            pl.BlockSpec((4 * Cout, 1), lambda n: (0, 0)),
            pl.BlockSpec((4, R * W, 2 * R * Wo), lambda n: (0, 0, 0)),
            pl.BlockSpec((9, Cout, Cmid), lambda n: (0, 0, 0)),
            pl.BlockSpec((Cout, 1), lambda n: (0, 0)),
            pl.BlockSpec((2, M), lambda n: (0, 0)),
        ],
        out_specs=pl.BlockSpec((NB, Cout, M), lambda n: (n, 0, 0)),
        scratch_shapes=[pltpu.VMEM((Cmid, L), jnp.float32)],   # flat padded concat
        compiler_params=pltpu.CompilerParams(
            dimension_semantics=("parallel",),
            vmem_limit_bytes=vmem_limit,
        ),
    )(x1f, x2f, wup, bt4, s, wc9, bc2, masks)

    return out.reshape(N, Cout, Ho, Wo)


# ----------------------------------------------------------------------------
# Pure-JAX reference (NCHW) for verification.
# ----------------------------------------------------------------------------
def reference_decoder(x1, x2, wt, bt, wc, bc):
    up = jnp.einsum('ncij,cdab->ndiajb', x1, wt)     # (N, Cout, H, 2, W, 2)
    N, Cout, H, _, W, _ = up.shape
    up = up.reshape(N, Cout, 2 * H, 2 * W) + bt[None, :, None, None]
    cat = jnp.concatenate([up, x2], axis=1)
    conv = jax.lax.conv_general_dilated(
        cat, wc, window_strides=(1, 1), padding=((1, 1), (1, 1)),
        dimension_numbers=('NCHW', 'OIHW', 'NCHW'))
    return jnp.maximum(conv + bc[None, :, None, None], 0.0)


if __name__ == "__main__":
    in_channels, middle_channels, out_channels = 4, 16, 8
    N, H, W = 2, 8, 8                                 # x1 spatial; x2 is 2H x 2W

    key = jax.random.PRNGKey(0)
    k1, k2, k3, k4, k5, k6 = jax.random.split(key, 6)

    x1 = jax.random.normal(k1, (N, in_channels, H, W), jnp.float32)
    x2 = jax.random.normal(k2, (N, middle_channels - out_channels, 2 * H, 2 * W),
                           jnp.float32)

    wt = 0.1 * jax.random.normal(k3, (in_channels, out_channels, 2, 2), jnp.float32)
    bt = 0.1 * jax.random.normal(k4, (out_channels,), jnp.float32)
    bc = 0.1 * jax.random.normal(k6, (out_channels,), jnp.float32)
    wc = 0.1 * jax.random.normal(k5, (out_channels, middle_channels, 3, 3), jnp.float32)

    out = jax.block_until_ready(decoder_forward(x1, x2, wt, bt, wc, bc))

    ref = reference_decoder(x1, x2, wt, bt, wc, bc)
    assert out.shape == (N, out_channels, 2 * H, 2 * W)
    assert jnp.allclose(out, ref, atol=1e-4, rtol=1e-4), "mismatch vs reference"
    print("KERNEL_OK")
</pallas_src>

<mosaic_0001>
module attributes {stable_mosaic.version = 11 : i64} {
  func.func @kernel(%arg0: i32, %arg1: memref<1x4x64xf32, #tpu.memory_space<vmem>>, %arg2: memref<1x8x256xf32, #tpu.memory_space<vmem>>, %arg3: memref<32x4xf32, #tpu.memory_space<vmem>>, %arg4: memref<32x1xf32, #tpu.memory_space<vmem>>, %arg5: memref<4x64x256xf32, #tpu.memory_space<vmem>>, %arg6: memref<9x8x16xf32, #tpu.memory_space<vmem>>, %arg7: memref<8x1xf32, #tpu.memory_space<vmem>>, %arg8: memref<2x256xf32, #tpu.memory_space<vmem>>, %arg9: memref<1x8x256xf32, #tpu.memory_space<vmem>>, %arg10: memref<16x401xf32, #tpu.memory_space<vmem>>) attributes {dimension_semantics = [#tpu.dimension_semantics<parallel>], iteration_bounds = array<i64: 2>, scalar_prefetch = 0 : i64, scratch_operands = 1 : i64, tpu.core_type = #tpu.core_type<tc>, window_params = [{transform_indices = @transform_0, window_bounds = array<i64: 1, 4, 64>}, {transform_indices = @transform_1, window_bounds = array<i64: 1, 8, 256>}, {pipeline_mode = #tpu.pipeline_mode<synchronous>, transform_indices = @transform_2, window_bounds = array<i64: 32, 4>}, {pipeline_mode = #tpu.pipeline_mode<synchronous>, transform_indices = @transform_3, window_bounds = array<i64: 32, 1>}, {pipeline_mode = #tpu.pipeline_mode<synchronous>, transform_indices = @transform_4, window_bounds = array<i64: 4, 64, 256>}, {pipeline_mode = #tpu.pipeline_mode<synchronous>, transform_indices = @transform_5, window_bounds = array<i64: 9, 8, 16>}, {pipeline_mode = #tpu.pipeline_mode<synchronous>, transform_indices = @transform_6, window_bounds = array<i64: 8, 1>}, {pipeline_mode = #tpu.pipeline_mode<synchronous>, transform_indices = @transform_7, window_bounds = array<i64: 2, 256>}, {transform_indices = @transform_8, window_bounds = array<i64: 1, 8, 256>}]} {
    %cst = arith.constant 0.000000e+00 : f32
    %0 = vector.broadcast %cst : f32 to vector<16x17xf32>
    %c0 = arith.constant 0 : index
    %c111 = arith.constant 111 : index
    %1 = vector.load %arg10[%c0, %c111] : memref<16x401xf32, #tpu.memory_space<vmem>>, vector<16x17xf32>
    tpu.vector_store %arg10[%c0, %c111], %0 {strides = array<i32>} : memref<16x401xf32, #tpu.memory_space<vmem>>, vector<16x17xf32>,
    %cst_0 = arith.constant 0.000000e+00 : f32
    %2 = vector.broadcast %cst_0 : f32 to vector<16x17xf32>
    %c0_1 = arith.constant 0 : index
    %c384 = arith.constant 384 : index
    %3 = vector.load %arg10[%c0_1, %c384] : memref<16x401xf32, #tpu.memory_space<vmem>>, vector<16x17xf32>
    tpu.vector_store %arg10[%c0_1, %c384], %2 {strides = array<i32>} : memref<16x401xf32, #tpu.memory_space<vmem>>, vector<16x17xf32>,
    %c0_2 = arith.constant 0 : index
    %c0_3 = arith.constant 0 : index
    %4 = vector.load %arg8[%c0_2, %c0_3] : memref<2x256xf32, #tpu.memory_space<vmem>>, vector<1x256xf32>
    %c1 = arith.constant 1 : index
    %c0_4 = arith.constant 0 : index
    %5 = vector.load %arg8[%c1, %c0_4] : memref<2x256xf32, #tpu.memory_space<vmem>>, vector<1x256xf32>
    %c0_5 = arith.constant 0 : index
    %c0_6 = arith.constant 0 : index
    %6 = vector.load %arg7[%c0_5, %c0_6] : memref<8x1xf32, #tpu.memory_space<vmem>>, vector<8x1xf32>
    %c0_7 = arith.constant 0 : index
    %c0_8 = arith.constant 0 : index
    %7 = vector.load %arg3[%c0_7, %c0_8] : memref<32x4xf32, #tpu.memory_space<vmem>>, vector<32x4xf32>
    %c0_9 = arith.constant 0 : index
    %c0_10 = arith.constant 0 : index
    %c0_11 = arith.constant 0 : index
    %8 = vector.load %arg1[%c0_9, %c0_10, %c0_11] : memref<1x4x64xf32, #tpu.memory_space<vmem>>, vector<1x4x64xf32>
    %9 = vector.shape_cast %8 : vector<1x4x64xf32> to vector<4x64xf32>
    %cst_12 = arith.constant dense<0.000000e+00> : vector<32x64xf32>
    %10 = tpu.matmul %7, %9, %cst_12 {dimension_numbers = #tpu.dot_dimension_numbers<[1], [0], [0], [1], [0, 0, 1, 1], [], []>} : vector<32x4xf32>, vector<4x64xf32>, vector<32x64xf32> -> vector<32x64xf32>
    %c0_13 = arith.constant 0 : index
    %c0_14 = arith.constant 0 : index
    %11 = vector.load %arg4[%c0_13, %c0_14] : memref<32x1xf32, #tpu.memory_space<vmem>>, vector<32x1xf32>
    %12 = vector.broadcast %11 : vector<32x1xf32> to vector<32x64xf32>
    %13 = arith.addf %10, %12 : vector<32x64xf32>
    %14 = vector.extract_strided_slice %13 {offsets = [0, 0], sizes = [8, 64], strides = [1, 1]} : vector<32x64xf32> to vector<8x64xf32>
    %c0_15 = arith.constant 0 : index
    %c0_16 = arith.constant 0 : index
    %c0_17 = arith.constant 0 : index
    %15 = vector.load %arg5[%c0_15, %c0_16, %c0_17] : memref<4x64x256xf32, #tpu.memory_space<vmem>>, vector<1x64x256xf32>
    %16 = vector.shape_cast %15 : vector<1x64x256xf32> to vector<64x256xf32>
    %cst_18 = arith.constant dense<0.000000e+00> : vector<8x256xf32>
    %17 = tpu.matmul %14, %16, %cst_18 {dimension_numbers = #tpu.dot_dimension_numbers<[1], [0], [0], [1], [0, 0, 1, 1], [], []>} : vector<8x64xf32>, vector<64x256xf32>, vector<8x256xf32> -> vector<8x256xf32>
    %18 = vector.extract_strided_slice %13 {offsets = [8, 0], sizes = [8, 64], strides = [1, 1]} : vector<32x64xf32> to vector<8x64xf32>
    %c1_19 = arith.constant 1 : index
    %c0_20 = arith.constant 0 : index
    %c0_21 = arith.constant 0 : index
    %19 = vector.load %arg5[%c1_19, %c0_20, %c0_21] : memref<4x64x256xf32, #tpu.memory_space<vmem>>, vector<1x64x256xf32>
    %20 = vector.shape_cast %19 : vector<1x64x256xf32> to vector<64x256xf32>
    %cst_22 = arith.constant dense<0.000000e+00> : vector<8x256xf32>
    %21 = tpu.matmul %18, %20, %cst_22 {dimension_numbers = #tpu.dot_dimension_numbers<[1], [0], [0], [1], [0, 0, 1, 1], [], []>} : vector<8x64xf32>, vector<64x256xf32>, vector<8x256xf32> -> vector<8x256xf32>
    %22 = arith.addf %17, %21 : vector<8x256xf32>
    %23 = vector.extract_strided_slice %13 {offsets = [16, 0], sizes = [8, 64], strides = [1, 1]} : vector<32x64xf32> to vector<8x64xf32>
    %c2 = arith.constant 2 : index
    %c0_23 = arith.constant 0 : index
    %c0_24 = arith.constant 0 : index
    %24 = vector.load %arg5[%c2, %c0_23, %c0_24] : memref<4x64x256xf32, #tpu.memory_space<vmem>>, vector<1x64x256xf32>
    %25 = vector.shape_cast %24 : vector<1x64x256xf32> to vector<64x256xf32>
    %cst_25 = arith.constant dense<0.000000e+00> : vector<8x256xf32>
    %26 = tpu.matmul %23, %25, %cst_25 {dimension_numbers = #tpu.dot_dimension_numbers<[1], [0], [0], [1], [0, 0, 1, 1], [], []>} : vector<8x64xf32>, vector<64x256xf32>, vector<8x256xf32> -> vector<8x256xf32>
    %27 = arith.addf %22, %26 : vector<8x256xf32>
    %28 = vector.extract_strided_slice %13 {offsets = [24, 0], sizes = [8, 64], strides = [1, 1]} : vector<32x64xf32> to vector<8x64xf32>
    %c3 = arith.constant 3 : index
    %c0_26 = arith.constant 0 : index
    %c0_27 = arith.constant 0 : index
    %29 = vector.load %arg5[%c3, %c0_26, %c0_27] : memref<4x64x256xf32, #tpu.memory_space<vmem>>, vector<1x64x256xf32>
    %30 = vector.shape_cast %29 : vector<1x64x256xf32> to vector<64x256xf32>
    %cst_28 = arith.constant dense<0.000000e+00> : vector<8x256xf32>
    %31 = tpu.matmul %28, %30, %cst_28 {dimension_numbers = #tpu.dot_dimension_numbers<[1], [0], [0], [1], [0, 0, 1, 1], [], []>} : vector<8x64xf32>, vector<64x256xf32>, vector<8x256xf32> -> vector<8x256xf32>
    %32 = arith.addf %27, %31 : vector<8x256xf32>
    %c0_29 = arith.constant 0 : index
    %c128 = arith.constant 128 : index
    %33 = vector.load %arg10[%c0_29, %c128] : memref<16x401xf32, #tpu.memory_space<vmem>>, vector<8x256xf32>
    tpu.vector_store %arg10[%c0_29, %c128], %32 {strides = array<i32>} : memref<16x401xf32, #tpu.memory_space<vmem>>, vector<8x256xf32>,
    %c0_30 = arith.constant 0 : index
    %c0_31 = arith.constant 0 : index
    %c0_32 = arith.constant 0 : index
    %34 = vector.load %arg2[%c0_30, %c0_31, %c0_32] : memref<1x8x256xf32, #tpu.memory_space<vmem>>, vector<1x8x256xf32>
    %35 = vector.shape_cast %34 : vector<1x8x256xf32> to vector<8x256xf32>
    %c8 = arith.constant 8 : index
    %c128_33 = arith.constant 128 : index
    %36 = vector.load %arg10[%c8, %c128_33] : memref<16x401xf32, #tpu.memory_space<vmem>>, vector<8x256xf32>
    tpu.vector_store %arg10[%c8, %c128_33], %35 {strides = array<i32>} : memref<16x401xf32, #tpu.memory_space<vmem>>, vector<8x256xf32>,
    %c0_34 = arith.constant 0 : index
    %c0_35 = arith.constant 0 : index
    %c0_36 = arith.constant 0 : index
    %37 = vector.load %arg6[%c0_34, %c0_35, %c0_36] : memref<9x8x16xf32, #tpu.memory_space<vmem>>, vector<1x8x16xf32>
    %38 = vector.shape_cast %37 : vector<1x8x16xf32> to vector<8x16xf32>
    %c0_37 = arith.constant 0 : index
    %c111_38 = arith.constant 111 : index
    %39 = vector.load %arg10[%c0_37, %c111_38] : memref<16x401xf32, #tpu.memory_space<vmem>>, vector<16x256xf32>
    %cst_39 = arith.constant dense<0.000000e+00> : vector<8x256xf32>
    %40 = tpu.matmul %38, %39, %cst_39 {dimension_numbers = #tpu.dot_dimension_numbers<[1], [0], [0], [1], [0, 0, 1, 1], [], []>} : vector<8x16xf32>, vector<16x256xf32>, vector<8x256xf32> -> vector<8x256xf32>
    %c1_40 = arith.constant 1 : index
    %c0_41 = arith.constant 0 : index
    %c0_42 = arith.constant 0 : index
    %41 = vector.load %arg6[%c1_40, %c0_41, %c0_42] : memref<9x8x16xf32, #tpu.memory_space<vmem>>, vector<1x8x16xf32>
    %42 = vector.shape_cast %41 : vector<1x8x16xf32> to vector<8x16xf32>
    %c0_43 = arith.constant 0 : index
    %c112 = arith.constant 112 : index
    %43 = vector.load %arg10[%c0_43, %c112] : memref<16x401xf32, #tpu.memory_space<vmem>>, vector<16x256xf32>
    %cst_44 = arith.constant dense<0.000000e+00> : vector<8x256xf32>
    %44 = tpu.matmul %42, %43, %cst_44 {dimension_numbers = #tpu.dot_dimension_numbers<[1], [0], [0], [1], [0, 0, 1, 1], [], []>} : vector<8x16xf32>, vector<16x256xf32>, vector<8x256xf32> -> vector<8x256xf32>
    %c2_45 = arith.constant 2 : index
    %c0_46 = arith.constant 0 : index
    %c0_47 = arith.constant 0 : index
    %45 = vector.load %arg6[%c2_45, %c0_46, %c0_47] : memref<9x8x16xf32, #tpu.memory_space<vmem>>, vector<1x8x16xf32>
    %46 = vector.shape_cast %45 : vector<1x8x16xf32> to vector<8x16xf32>
    %c0_48 = arith.constant 0 : index
    %c113 = arith.constant 113 : index
    %47 = vector.load %arg10[%c0_48, %c113] : memref<16x401xf32, #tpu.memory_space<vmem>>, vector<16x256xf32>
    %cst_49 = arith.constant dense<0.000000e+00> : vector<8x256xf32>
    %48 = tpu.matmul %46, %47, %cst_49 {dimension_numbers = #tpu.dot_dimension_numbers<[1], [0], [0], [1], [0, 0, 1, 1], [], []>} : vector<8x16xf32>, vector<16x256xf32>, vector<8x256xf32> -> vector<8x256xf32>
    %c3_50 = arith.constant 3 : index
    %c0_51 = arith.constant 0 : index
    %c0_52 = arith.constant 0 : index
    %49 = vector.load %arg6[%c3_50, %c0_51, %c0_52] : memref<9x8x16xf32, #tpu.memory_space<vmem>>, vector<1x8x16xf32>
    %50 = vector.shape_cast %49 : vector<1x8x16xf32> to vector<8x16xf32>
    %c0_53 = arith.constant 0 : index
    %c127 = arith.constant 127 : index
    %51 = vector.load %arg10[%c0_53, %c127] : memref<16x401xf32, #tpu.memory_space<vmem>>, vector<16x256xf32>
    %cst_54 = arith.constant dense<0.000000e+00> : vector<8x256xf32>
    %52 = tpu.matmul %50, %51, %cst_54 {dimension_numbers = #tpu.dot_dimension_numbers<[1], [0], [0], [1], [0, 0, 1, 1], [], []>} : vector<8x16xf32>, vector<16x256xf32>, vector<8x256xf32> -> vector<8x256xf32>
    %c4 = arith.constant 4 : index
    %c0_55 = arith.constant 0 : index
    %c0_56 = arith.constant 0 : index
    %53 = vector.load %arg6[%c4, %c0_55, %c0_56] : memref<9x8x16xf32, #tpu.memory_space<vmem>>, vector<1x8x16xf32>
    %54 = vector.shape_cast %53 : vector<1x8x16xf32> to vector<8x16xf32>
    %c0_57 = arith.constant 0 : index
    %c128_58 = arith.constant 128 : index
    %55 = vector.load %arg10[%c0_57, %c128_58] : memref<16x401xf32, #tpu.memory_space<vmem>>, vector<16x256xf32>
    %cst_59 = arith.constant dense<0.000000e+00> : vector<8x256xf32>
    %56 = tpu.matmul %54, %55, %cst_59 {dimension_numbers = #tpu.dot_dimension_numbers<[1], [0], [0], [1], [0, 0, 1, 1], [], []>} : vector<8x16xf32>, vector<16x256xf32>, vector<8x256xf32> -> vector<8x256xf32>
    %c5 = arith.constant 5 : index
    %c0_60 = arith.constant 0 : index
    %c0_61 = arith.constant 0 : index
    %57 = vector.load %arg6[%c5, %c0_60, %c0_61] : memref<9x8x16xf32, #tpu.memory_space<vmem>>, vector<1x8x16xf32>
    %58 = vector.shape_cast %57 : vector<1x8x16xf32> to vector<8x16xf32>
    %c0_62 = arith.constant 0 : index
    %c129 = arith.constant 129 : index
    %59 = vector.load %arg10[%c0_62, %c129] : memref<16x401xf32, #tpu.memory_space<vmem>>, vector<16x256xf32>
    %cst_63 = arith.constant dense<0.000000e+00> : vector<8x256xf32>
    %60 = tpu.matmul %58, %59, %cst_63 {dimension_numbers = #tpu.dot_dimension_numbers<[1], [0], [0], [1], [0, 0, 1, 1], [], []>} : vector<8x16xf32>, vector<16x256xf32>, vector<8x256xf32> -> vector<8x256xf32>
    %61 = arith.addf %40, %52 : vector<8x256xf32>
    %62 = arith.addf %44, %56 : vector<8x256xf32>
    %63 = arith.addf %48, %60 : vector<8x256xf32>
    %c6 = arith.constant 6 : index
    %c0_64 = arith.constant 0 : index
    %c0_65 = arith.constant 0 : index
    %64 = vector.load %arg6[%c6, %c0_64, %c0_65] : memref<9x8x16xf32, #tpu.memory_space<vmem>>, vector<1x8x16xf32>
    %65 = vector.shape_cast %64 : vector<1x8x16xf32> to vector<8x16xf32>
    %c0_66 = arith.constant 0 : index
    %c143 = arith.constant 143 : index
    %66 = vector.load %arg10[%c0_66, %c143] : memref<16x401xf32, #tpu.memory_space<vmem>>, vector<16x256xf32>
    %cst_67 = arith.constant dense<0.000000e+00> : vector<8x256xf32>
    %67 = tpu.matmul %65, %66, %cst_67 {dimension_numbers = #tpu.dot_dimension_numbers<[1], [0], [0], [1], [0, 0, 1, 1], [], []>} : vector<8x16xf32>, vector<16x256xf32>, vector<8x256xf32> -> vector<8x256xf32>
    %c7 = arith.constant 7 : index
    %c0_68 = arith.constant 0 : index
    %c0_69 = arith.constant 0 : index
    %68 = vector.load %arg6[%c7, %c0_68, %c0_69] : memref<9x8x16xf32, #tpu.memory_space<vmem>>, vector<1x8x16xf32>
    %69 = vector.shape_cast %68 : vector<1x8x16xf32> to vector<8x16xf32>
    %c0_70 = arith.constant 0 : index
    %c144 = arith.constant 144 : index
    %70 = vector.load %arg10[%c0_70, %c144] : memref<16x401xf32, #tpu.memory_space<vmem>>, vector<16x256xf32>
    %cst_71 = arith.constant dense<0.000000e+00> : vector<8x256xf32>
    %71 = tpu.matmul %69, %70, %cst_71 {dimension_numbers = #tpu.dot_dimension_numbers<[1], [0], [0], [1], [0, 0, 1, 1], [], []>} : vector<8x16xf32>, vector<16x256xf32>, vector<8x256xf32> -> vector<8x256xf32>
    %c8_72 = arith.constant 8 : index
    %c0_73 = arith.constant 0 : index
    %c0_74 = arith.constant 0 : index
    %72 = vector.load %arg6[%c8_72, %c0_73, %c0_74] : memref<9x8x16xf32, #tpu.memory_space<vmem>>, vector<1x8x16xf32>
    %73 = vector.shape_cast %72 : vector<1x8x16xf32> to vector<8x16xf32>
    %c0_75 = arith.constant 0 : index
    %c145 = arith.constant 145 : index
    %74 = vector.load %arg10[%c0_75, %c145] : memref<16x401xf32, #tpu.memory_space<vmem>>, vector<16x256xf32>
    %cst_76 = arith.constant dense<0.000000e+00> : vector<8x256xf32>
    %75 = tpu.matmul %73, %74, %cst_76 {dimension_numbers = #tpu.dot_dimension_numbers<[1], [0], [0], [1], [0, 0, 1, 1], [], []>} : vector<8x16xf32>, vector<16x256xf32>, vector<8x256xf32> -> vector<8x256xf32>
    %76 = arith.addf %61, %67 : vector<8x256xf32>
    %77 = arith.addf %62, %71 : vector<8x256xf32>
    %78 = arith.addf %63, %75 : vector<8x256xf32>
    %79 = vector.broadcast %4 : vector<1x256xf32> to vector<8x256xf32>
    %80 = arith.mulf %79, %76 : vector<8x256xf32>
    %81 = arith.addf %77, %80 : vector<8x256xf32>
    %82 = vector.broadcast %5 : vector<1x256xf32> to vector<8x256xf32>
    %83 = arith.mulf %82, %78 : vector<8x256xf32>
    %84 = arith.addf %81, %83 : vector<8x256xf32>
    %85 = vector.broadcast %6 : vector<8x1xf32> to vector<8x256xf32>
    %86 = arith.addf %84, %85 : vector<8x256xf32>
    %cst_77 = arith.constant 0.000000e+00 : f32
    %87 = vector.broadcast %cst_77 : f32 to vector<8x256xf32>
    %88 = arith.maximumf %86, %87 : vector<8x256xf32>
    %c0_78 = arith.constant 0 : index
    %c0_79 = arith.constant 0 : index
    %c0_80 = arith.constant 0 : index
    %89 = vector.load %arg9[%c0_78, %c0_79, %c0_80] : memref<1x8x256xf32, #tpu.memory_space<vmem>>, vector<1x8x256xf32>
    %90 = vector.shape_cast %89 : vector<1x8x256xf32> to vector<8x256xf32>
    %91 = vector.shape_cast %88 : vector<8x256xf32> to vector<1x8x256xf32>
    tpu.vector_store %arg9[%c0_78, %c0_79, %c0_80], %91 {strides = array<i32>} : memref<1x8x256xf32, #tpu.memory_space<vmem>>, vector<1x8x256xf32>,
    return
  }
  func.func @transform_0(%arg0: i32) -> (i32, i32, i32) {
    %c0_i32 = arith.constant 0 : i32
    %c0_i32_0 = arith.constant 0 : i32
    %c0_i32_1 = arith.constant 0 : i32
    return %arg0, %c0_i32, %c0_i32_0 : i32, i32, i32
  }
  func.func @transform_1(%arg0: i32) -> (i32, i32, i32) {
    %c0_i32 = arith.constant 0 : i32
    %c0_i32_0 = arith.constant 0 : i32
    %c0_i32_1 = arith.constant 0 : i32
    return %arg0, %c0_i32, %c0_i32_0 : i32, i32, i32
  }
  func.func @transform_2(%arg0: i32) -> (i32, i32) {
    %c0_i32 = arith.constant 0 : i32
    %c0_i32_0 = arith.constant 0 : i32
    %c0_i32_1 = arith.constant 0 : i32
    return %c0_i32, %c0_i32_0 : i32, i32
  }
  func.func @transform_3(%arg0: i32) -> (i32, i32) {
    %c0_i32 = arith.constant 0 : i32
    %c0_i32_0 = arith.constant 0 : i32
    %c0_i32_1 = arith.constant 0 : i32
    return %c0_i32, %c0_i32_0 : i32, i32
  }
  func.func @transform_4(%arg0: i32) -> (i32, i32, i32) {
    %c0_i32 = arith.constant 0 : i32
    %c0_i32_0 = arith.constant 0 : i32
    %c0_i32_1 = arith.constant 0 : i32
    %c0_i32_2 = arith.constant 0 : i32
    return %c0_i32, %c0_i32_0, %c0_i32_1 : i32, i32, i32
  }
  func.func @transform_5(%arg0: i32) -> (i32, i32, i32) {
    %c0_i32 = arith.constant 0 : i32
    %c0_i32_0 = arith.constant 0 : i32
    %c0_i32_1 = arith.constant 0 : i32
    %c0_i32_2 = arith.constant 0 : i32
    return %c0_i32, %c0_i32_0, %c0_i32_1 : i32, i32, i32
  }
  func.func @transform_6(%arg0: i32) -> (i32, i32) {
    %c0_i32 = arith.constant 0 : i32
    %c0_i32_0 = arith.constant 0 : i32
    %c0_i32_1 = arith.constant 0 : i32
    return %c0_i32, %c0_i32_0 : i32, i32
  }
  func.func @transform_7(%arg0: i32) -> (i32, i32) {
    %c0_i32 = arith.constant 0 : i32
    %c0_i32_0 = arith.constant 0 : i32
    %c0_i32_1 = arith.constant 0 : i32
    return %c0_i32, %c0_i32_0 : i32, i32
  }
  func.func @transform_8(%arg0: i32) -> (i32, i32, i32) {
    %c0_i32 = arith.constant 0 : i32
    %c0_i32_0 = arith.constant 0 : i32
    %c0_i32_1 = arith.constant 0 : i32
    return %arg0, %c0_i32, %c0_i32_0 : i32, i32, i32
  }
}

</mosaic_0001>

<llo_original>
// kernel: tpu_custom_call.1
$region0: #{tpu_custom_call.1}
  #allocation0 [shape = 'u32[]', space=smem, size = 0x4, offset = 0x4, fixed_abs, tag = 'smem constant byte address 0x4 - core index']
  #allocation1 [shape = 'u32[144,128]{1,0:T(1,128)}', space=vmem, size = 0x12000, scoped, tag = 'internal scratch']
  #allocation2 [shape = 'f32[16,401]{1,0:T(8,128)}', space=vmem, size = 0x8000, scoped, tag = 'scratch operand']
  %s0 = inlined_call_operand.vmem [shape: f32[2,4,64], index: 0, kind: input, shape index: {}]
  %s1 = inlined_call_operand.hbm [shape: f32[2,8,256], index: 1, kind: input, shape index: {}]
  %s2 = inlined_call_operand.vmem [shape: f32[32,4], index: 2, kind: input, shape index: {}]
  %s3 = inlined_call_operand.vmem [shape: f32[32,1], index: 3, kind: input, shape index: {}]
  %s4 = inlined_call_operand.hbm [shape: f32[4,64,256], index: 4, kind: input, shape index: {}]
  %s5 = inlined_call_operand.vmem [shape: f32[9,8,16], index: 5, kind: input, shape index: {}]
  %s6 = inlined_call_operand.vmem [shape: f32[8,1], index: 6, kind: input, shape index: {}]
  %s7 = inlined_call_operand.vmem [shape: f32[2,256], index: 7, kind: input, shape index: {}]
  %s8 = inlined_call_operand.hbm [shape: f32[2,8,256], index: 8, kind: output, shape index: {}]
  %s9 = sld [smem:[#allocation0]]
  $region73: #{tpu_custom_call.1} parent=0
    _
  %s11 = ssub.s32 1, %s9
  %s12 = scalar_select 0, %s11, %s9
  $region1: #{tpu_custom_call.1} parent=0
    #allocation3 [shape = 'u8[16384]{0}', space=vmem, size = 0x4000, scoped, tag = 'input window, operand 1']
    #allocation4 [shape = 's32[2]{0}', space=sflag, size = 0x8, scoped, tag = 'scoped memory for tpu_custom_call.1']
    #allocation5 [shape = 's32[2]{0}', space=sflag, size = 0x8, scoped, tag = 'scoped memory for tpu_custom_call.1']
    #allocation6 [shape = 'u8[262144]{0}', space=vmem, size = 0x40000, scoped, tag = 'input window, operand 4, single buffered']
    #allocation7 [shape = 's32[1]{0}', space=sflag, size = 0x4, scoped, tag = 'scoped memory for tpu_custom_call.1']
    #allocation8 [shape = 'u8[16384]{0}', space=vmem, size = 0x4000, scoped, tag = 'output window, operand 0']
    %13 = vsyncpa [#allocation4], 0
    %s14 = scalar_lea.sflag [#allocation4], 1
    %15 = vsyncpa %s14, 0
    %16 = vsyncpa [#allocation7], 0
    %17 = vsyncpa [#allocation5], 0
    %s18 = scalar_lea.sflag [#allocation5], 1
    %19 = vsyncpa %s18, 0
    loop: start=0, step=1, limit=4
    $region2: #{tpu_custom_call.1} parent=1 // loop_pre_header
      _
    $region3: #{tpu_custom_call.1} parent=1 // loop_header
      %s21 = sphi 0, %s25
      %p22 = scmp.ge.s32.totalorder %s21, 4
      %s31 = sphi 0, %s33
      %s34 = sphi 0, %s31
      %s35 = sphi 0, %s34
      %s51 = sphi 0, %s35
      %s57 = sphi 0, %s59
      %s60 = sphi 0, %s57
      %s61 = sphi 0, %s60
      %s77 = sphi 0, %s61
      %s81 = sphi 0, %s81
      %s83 = sphi 0, %s81
      %s84 = sphi 0, %s83
      %s98 = sphi 0, %s84
      %s102 = sphi 0, %s102
      %s104 = sphi 0, %s102
      %s105 = sphi 0, %s104
      %s119 = sphi 0, %s105
      %s123 = sphi 0, %s123
      %s125 = sphi 0, %s123
      %s126 = sphi 0, %s125
      %s140 = sphi 0, %s126
      %s144 = sphi 0, %s144
      %s146 = sphi 0, %s144
      %s147 = sphi 0, %s146
      %s161 = sphi 0, %s147
      %s165 = sphi 0, %s165
      %s167 = sphi 0, %s165
      %s168 = sphi 0, %s167
      %s182 = sphi 0, %s168
      %s186 = sphi 0, %s186
      %s188 = sphi 0, %s186
      %s189 = sphi 0, %s188
      %s203 = sphi 0, %s189
      %s209 = sphi 0, %s211
      %s212 = sphi 0, %s209
      %s213 = sphi 0, %s212
      %s229 = sphi 0, %s213
    $region4: #{tpu_custom_call.1} parent=1 // loop_header_branch
      %24 = sbr.rel (%p22) target = $region8
    $region5: #{tpu_custom_call.1} parent=1 // loop_body
      %s26 = ssub.s32 %s21, 1
      %s27 = ssub.s32 %s21, 2
      %s28 = sadd.s32 %s21, 1
      %s29 = ssub.s32 %s21, %s28
      %p30 = scmp.eq.s32.totalorder %s29, 0
      %s32 = sadd.s32 %s31, 1
      %s33 = scalar_select %p30, %s31, %s32
      %p36 = pneg %p30
      %p37 = scmp.eq.s32.totalorder %s21, 1
      %p38 = por %p36, %p37
      %p39 = scmp.ne.s32.totalorder %s31, %s34
      %p40 = scmp.eq.s32.totalorder %s21, 0
      %p41 = por %p39, %p40
      %p42 = scmp.ne.s32.totalorder %s31, %s34
      %p43 = scmp.eq.s32.totalorder %s26, 1
      %p44 = por %p42, %p43
      %p45 = scmp.ne.s32.totalorder %s34, %s35
      %p46 = scmp.eq.s32.totalorder %s26, 0
      %p47 = por %p45, %p46
      %p48 = scmp.ne.s32.totalorder %s34, %s35
      %p49 = scmp.eq.s32.totalorder %s27, 1
      %p50 = por %p48, %p49
      %p52 = scmp.ne.s32.totalorder %s35, %s51
      %p53 = scmp.eq.s32.totalorder %s27, 0
      %p54 = por %p52, %p53
      %s55 = ssub.s32 %s21, %s28
      %p56 = scmp.eq.s32.totalorder %s55, 0
      %s58 = sadd.s32 %s57, 1
      %s59 = scalar_select %p56, %s57, %s58
      %p62 = pneg %p56
      %p63 = scmp.eq.s32.totalorder %s21, 1
      %p64 = por %p62, %p63
      %p65 = scmp.ne.s32.totalorder %s57, %s60
      %p66 = scmp.eq.s32.totalorder %s21, 0
      %p67 = por %p65, %p66
      %p68 = scmp.ne.s32.totalorder %s57, %s60
      %p69 = scmp.eq.s32.totalorder %s26, 1
      %p70 = por %p68, %p69
      %p71 = scmp.ne.s32.totalorder %s60, %s61
      %p72 = scmp.eq.s32.totalorder %s26, 0
      %p73 = por %p71, %p72
      %p74 = scmp.ne.s32.totalorder %s60, %s61
      %p75 = scmp.eq.s32.totalorder %s27, 1
      %p76 = por %p74, %p75
      %p78 = scmp.ne.s32.totalorder %s61, %s77
      %p79 = scmp.eq.s32.totalorder %s27, 0
      %p80 = por %p78, %p79
      %s82 = sadd.s32 %s81, 1
      %p85 = scmp.eq.s32.totalorder %s21, 1
      %p86 = scmp.ne.s32.totalorder %s81, %s83
      %p87 = scmp.eq.s32.totalorder %s21, 0
      %p88 = por %p86, %p87
      %p89 = scmp.ne.s32.totalorder %s81, %s83
      %p90 = scmp.eq.s32.totalorder %s26, 1
      %p91 = por %p89, %p90
      %p92 = scmp.ne.s32.totalorder %s83, %s84
      %p93 = scmp.eq.s32.totalorder %s26, 0
      %p94 = por %p92, %p93
      %p95 = scmp.ne.s32.totalorder %s83, %s84
      %p96 = scmp.eq.s32.totalorder %s27, 1
      %p97 = por %p95, %p96
      %p99 = scmp.ne.s32.totalorder %s84, %s98
      %p100 = scmp.eq.s32.totalorder %s27, 0
      %p101 = por %p99, %p100
      %s103 = sadd.s32 %s102, 1
      %p106 = scmp.eq.s32.totalorder %s21, 1
      %p107 = scmp.ne.s32.totalorder %s102, %s104
      %p108 = scmp.eq.s32.totalorder %s21, 0
      %p109 = por %p107, %p108
      %p110 = scmp.ne.s32.totalorder %s102, %s104
      %p111 = scmp.eq.s32.totalorder %s26, 1
      %p112 = por %p110, %p111
      %p113 = scmp.ne.s32.totalorder %s104, %s105
      %p114 = scmp.eq.s32.totalorder %s26, 0
      %p115 = por %p113, %p114
      %p116 = scmp.ne.s32.totalorder %s104, %s105
      %p117 = scmp.eq.s32.totalorder %s27, 1
      %p118 = por %p116, %p117
      %p120 = scmp.ne.s32.totalorder %s105, %s119
      %p121 = scmp.eq.s32.totalorder %s27, 0
      %p122 = por %p120, %p121
      %s124 = sadd.s32 %s123, 1
      %p127 = scmp.eq.s32.totalorder %s21, 1
      %p128 = scmp.ne.s32.totalorder %s123, %s125
      %p129 = scmp.eq.s32.totalorder %s21, 0
      %p130 = por %p128, %p129
      %p131 = scmp.ne.s32.totalorder %s123, %s125
      %p132 = scmp.eq.s32.totalorder %s26, 1
      %p133 = por %p131, %p132
      %p134 = scmp.ne.s32.totalorder %s125, %s126
      %p135 = scmp.eq.s32.totalorder %s26, 0
      %p136 = por %p134, %p135
      %p137 = scmp.ne.s32.totalorder %s125, %s126
      %p138 = scmp.eq.s32.totalorder %s27, 1
      %p139 = por %p137, %p138
      %p141 = scmp.ne.s32.totalorder %s126, %s140
      %p142 = scmp.eq.s32.totalorder %s27, 0
      %p143 = por %p141, %p142
      %s145 = sadd.s32 %s144, 1
      %p148 = scmp.eq.s32.totalorder %s21, 1
      %p149 = scmp.ne.s32.totalorder %s144, %s146
      %p150 = scmp.eq.s32.totalorder %s21, 0
      %p151 = por %p149, %p150
      %p152 = scmp.ne.s32.totalorder %s144, %s146
      %p153 = scmp.eq.s32.totalorder %s26, 1
      %p154 = por %p152, %p153
      %p155 = scmp.ne.s32.totalorder %s146, %s147
      %p156 = scmp.eq.s32.totalorder %s26, 0
      %p157 = por %p155, %p156
      %p158 = scmp.ne.s32.totalorder %s146, %s147
      %p159 = scmp.eq.s32.totalorder %s27, 1
      %p160 = por %p158, %p159
      %p162 = scmp.ne.s32.totalorder %s147, %s161
      %p163 = scmp.eq.s32.totalorder %s27, 0
      %p164 = por %p162, %p163
      %s166 = sadd.s32 %s165, 1
      %p169 = scmp.eq.s32.totalorder %s21, 1
      %p170 = scmp.ne.s32.totalorder %s165, %s167
      %p171 = scmp.eq.s32.totalorder %s21, 0
      %p172 = por %p170, %p171
      %p173 = scmp.ne.s32.totalorder %s165, %s167
      %p174 = scmp.eq.s32.totalorder %s26, 1
      %p175 = por %p173, %p174
      %p176 = scmp.ne.s32.totalorder %s167, %s168
      %p177 = scmp.eq.s32.totalorder %s26, 0
      %p178 = por %p176, %p177
      %p179 = scmp.ne.s32.totalorder %s167, %s168
      %p180 = scmp.eq.s32.totalorder %s27, 1
      %p181 = por %p179, %p180
      %p183 = scmp.ne.s32.totalorder %s168, %s182
      %p184 = scmp.eq.s32.totalorder %s27, 0
      %p185 = por %p183, %p184
      %s187 = sadd.s32 %s186, 1
      %p190 = scmp.eq.s32.totalorder %s21, 1
      %p191 = scmp.ne.s32.totalorder %s186, %s188
      %p192 = scmp.eq.s32.totalorder %s21, 0
      %p193 = por %p191, %p192
      %p194 = scmp.ne.s32.totalorder %s186, %s188
      %p195 = scmp.eq.s32.totalorder %s26, 1
      %p196 = por %p194, %p195
      %p197 = scmp.ne.s32.totalorder %s188, %s189
      %p198 = scmp.eq.s32.totalorder %s26, 0
      %p199 = por %p197, %p198
      %p200 = scmp.ne.s32.totalorder %s188, %s189
      %p201 = scmp.eq.s32.totalorder %s27, 1
      %p202 = por %p200, %p201
      %p204 = scmp.ne.s32.totalorder %s189, %s203
      %p205 = scmp.eq.s32.totalorder %s27, 0
      %p206 = por %p204, %p205
      %s207 = ssub.s32 %s21, %s28
      %p208 = scmp.eq.s32.totalorder %s207, 0
      %s210 = sadd.s32 %s209, 1
      %s211 = scalar_select %p208, %s209, %s210
      %p214 = pneg %p208
      %p215 = scmp.eq.s32.totalorder %s21, 1
      %p216 = por %p214, %p215
      %p217 = scmp.ne.s32.totalorder %s209, %s212
      %p218 = scmp.eq.s32.totalorder %s21, 0
      %p219 = por %p217, %p218
      %p220 = scmp.ne.s32.totalorder %s209, %s212
      %p221 = scmp.eq.s32.totalorder %s26, 1
      %p222 = por %p220, %p221
      %p223 = scmp.ne.s32.totalorder %s212, %s213
      %p224 = scmp.eq.s32.totalorder %s26, 0
      %p225 = por %p223, %p224
      %p226 = scmp.ne.s32.totalorder %s212, %s213
      %p227 = scmp.eq.s32.totalorder %s27, 1
      %p228 = por %p226, %p227
      %p230 = scmp.ne.s32.totalorder %s213, %s229
      %p231 = scmp.eq.s32.totalorder %s27, 0
      %p232 = por %p230, %p231
      %p233 = scmp.le.s32.totalorder 1, %s21
      %p234 = scmp.lt.s32.totalorder %s21, 3
      %p235 = pnand %p233, %p234
      %p236 = pneg %p235
      // Predicated region
      $region9: #{tpu_custom_call.1} parent=5 // pred_check
        _
      $region10: #{tpu_custom_call.1} parent=5 // pred_check_branch
        %238 = sbr.rel (%p235) target = $region12
      $region11: #{tpu_custom_call.1} parent=5 // pred_region
        %s239 = ssub.s32 %s21, 1
        // Predicated region
        $region13: #{tpu_custom_call.1} parent=11 // pred_check
          %p240 = pneg %p94
        $region14: #{tpu_custom_call.1} parent=11 // pred_check_branch
          %242 = sbr.rel (%p240) target = $region16
        $region15: #{tpu_custom_call.1} parent=11 // pred_region
          _
        $region16: #{tpu_custom_call.1} parent=11 // pred_fallthru
          _
        // Predicated region
        $region17: #{tpu_custom_call.1} parent=11 // pred_check
          %p243 = pneg %p115
        $region18: #{tpu_custom_call.1} parent=11 // pred_check_branch
          %245 = sbr.rel (%p243) target = $region20
        $region19: #{tpu_custom_call.1} parent=11 // pred_region
          _
        $region20: #{tpu_custom_call.1} parent=11 // pred_fallthru
          _
        // Predicated region
        $region21: #{tpu_custom_call.1} parent=11 // pred_check
          %p246 = pneg %p136
        $region22: #{tpu_custom_call.1} parent=11 // pred_check_branch
          %248 = sbr.rel (%p246) target = $region24
        $region23: #{tpu_custom_call.1} parent=11 // pred_region
          %s250 = ssub.s32 8192, 8192
          %251 = vsyncadd [#allocation7], %s250
          %s252 = sshll.u32 [#allocation6], 4
          %s253 = int_to_ptr.vmem [resolvable:$true] %s252
          %258 = dma.hbm_to_vmem [thread:$0]  %s4, 8192, %s253, [#allocation7], 256, 256, 16
        $region24: #{tpu_custom_call.1} parent=11 // pred_fallthru
          _
        // Predicated region
        $region25: #{tpu_custom_call.1} parent=11 // pred_check
          %p259 = pneg %p157
        $region26: #{tpu_custom_call.1} parent=11 // pred_check_branch
          %261 = sbr.rel (%p259) target = $region28
        $region27: #{tpu_custom_call.1} parent=11 // pred_region
          _
        $region28: #{tpu_custom_call.1} parent=11 // pred_fallthru
          _
        // Predicated region
        $region29: #{tpu_custom_call.1} parent=11 // pred_check
          %p262 = pneg %p178
        $region30: #{tpu_custom_call.1} parent=11 // pred_check_branch
          %264 = sbr.rel (%p262) target = $region32
        $region31: #{tpu_custom_call.1} parent=11 // pred_region
          _
        $region32: #{tpu_custom_call.1} parent=11 // pred_fallthru
          _
        // Predicated region
        $region33: #{tpu_custom_call.1} parent=11 // pred_check
          %p265 = pneg %p199
        $region34: #{tpu_custom_call.1} parent=11 // pred_check_branch
          %267 = sbr.rel (%p265) target = $region36
        $region35: #{tpu_custom_call.1} parent=11 // pred_region
          _
        $region36: #{tpu_custom_call.1} parent=11 // pred_fallthru
          _
      $region12: #{tpu_custom_call.1} parent=5 // pred_fallthru
        _
      %p268 = scmp.lt.s32.totalorder %s21, 2
      // Predicated region
      $region37: #{tpu_custom_call.1} parent=5 // pred_check
        %p269 = pneg %p268
      $region38: #{tpu_custom_call.1} parent=5 // pred_check_branch
        %271 = sbr.rel (%p269) target = $region40
      $region39: #{tpu_custom_call.1} parent=5 // pred_region
        // Predicated region
        $region41: #{tpu_custom_call.1} parent=39 // pred_check
          %p272 = pneg %p41
        $region42: #{tpu_custom_call.1} parent=39 // pred_check_branch
          %274 = sbr.rel (%p272) target = $region44
        $region43: #{tpu_custom_call.1} parent=39 // pred_region
          %p275 = scmp.lt.s32.totalorder %s21, 1
          %s276 = scalar_select %p275, %s21, 1
          %s277 = smul.addr %s276, 4
          %s278 = scalar_lea.vmem %s0, %s277
        $region44: #{tpu_custom_call.1} parent=39 // pred_fallthru
          _
        // Predicated region
        $region45: #{tpu_custom_call.1} parent=39 // pred_check
          %p279 = pneg %p67
        $region46: #{tpu_custom_call.1} parent=39 // pred_check_branch
          %281 = sbr.rel (%p279) target = $region48
        $region47: #{tpu_custom_call.1} parent=39 // pred_region
          %s282 = sand.u32 %s57, 1
          %s283 = scalar_lea.sflag [#allocation4], %s282
          %s284 = sand.u32 %s57, 1
          %s285 = smul.addr %s284, 16
          %s286 = scalar_lea.vmem [#allocation3], %s285
          %s288 = ssub.s32 256, 256
          %289 = vsyncadd %s283, %s288
          %s290 = smul.addr %s21, 2
          %s291 = smul.addr %s290, 128
          %s292 = scalar_lea.hbm %s1, %s291
          %s294 = sshll.u32 %s286, 4
          %s295 = int_to_ptr.vmem [resolvable:$true] %s294
          %297 = dma.hbm_to_vmem [thread:$0]  %s292, 256, %s295, %s283
        $region48: #{tpu_custom_call.1} parent=39 // pred_fallthru
          _
      $region40: #{tpu_custom_call.1} parent=5 // pred_fallthru
        _
      %p298 = scmp.le.s32.totalorder 1, %s21
      %p299 = scmp.lt.s32.totalorder %s21, 3
      %p300 = pnand %p298, %p299
      %p301 = pneg %p300
      // Predicated region
      $region49: #{tpu_custom_call.1} parent=5 // pred_check
        _
      $region50: #{tpu_custom_call.1} parent=5 // pred_check_branch
        %303 = sbr.rel (%p300) target = $region52
      $region51: #{tpu_custom_call.1} parent=5 // pred_region
        %s304 = ssub.s32 %s21, 1
        %s305 = sand.u32 %s60, 1
        %s306 = scalar_lea.sflag [#allocation4], %s305
        %s307 = sand.u32 %s60, 1
        %s308 = smul.addr %s307, 16
        %s309 = scalar_lea.vmem [#allocation3], %s308
        // Predicated region
        $region53: #{tpu_custom_call.1} parent=51 // pred_check
          %p310 = pneg %p73
        $region54: #{tpu_custom_call.1} parent=51 // pred_check_branch
          %312 = sbr.rel (%p310) target = $region56
        $region55: #{tpu_custom_call.1} parent=51 // pred_region
          %313 = dma.done %s306, 256
        $region56: #{tpu_custom_call.1} parent=51 // pred_fallthru
          _
        // Predicated region
        $region57: #{tpu_custom_call.1} parent=51 // pred_check
          %p314 = pneg %p136
        $region58: #{tpu_custom_call.1} parent=51 // pred_check_branch
          %316 = sbr.rel (%p314) target = $region60
        $region59: #{tpu_custom_call.1} parent=51 // pred_region
          %317 = dma.done [#allocation7], 8192
        $region60: #{tpu_custom_call.1} parent=51 // pred_fallthru
          _
        %p318 = scmp.lt.s32.totalorder %s26, 1
        %s319 = scalar_select %p318, %s26, 1
        %s320 = smul.addr %s319, 4
        %s321 = scalar_lea.vmem %s0, %s320
        %p322 = pneg %p47
        %p323 = pneg %p44
        %s324 = sand.u32 %s60, 1
        %s325 = scalar_lea.sflag [#allocation4], %s324
        %s326 = sand.u32 %s60, 1
        %s327 = smul.addr %s326, 16
        %s328 = scalar_lea.vmem [#allocation3], %s327
        %p329 = pneg %p73
        %p330 = pneg %p70
        %p331 = pneg %p94
        %p332 = pneg %p91
        %p333 = pneg %p115
        %p334 = pneg %p112
        %p335 = pneg %p136
        %p336 = pneg %p133
        %p337 = pneg %p157
        %p338 = pneg %p154
        %p339 = pneg %p178
        %p340 = pneg %p175
        %p341 = pneg %p199
        %p342 = pneg %p196
        %p343 = pneg %p225
        %p344 = pneg %p222
        %s345 = sand.u32 %s212, 1
        %s346 = scalar_lea.sflag [#allocation5], %s345
        %s347 = sand.u32 %s212, 1
        %s348 = smul.addr %s347, 16
        %s349 = scalar_lea.vmem [#allocation8], %s348
        %p350 = scmp.lt.s32.totalorder %s26, 1
        %s351 = scalar_select %p350, %s26, 1
        %s352 = smul.addr %s351, 4
        %s353 = scalar_lea.vmem %s0, %s352
        %vm354 = vcmask 1048440
        %355 = vst.msk [vmem:[#allocation2] sm:$0xff] %vm354, 0.0
        %356 = vst.msk [vmem:[#allocation2 + $0x20] sm:$0xff] %vm354, 0.0
        %vm357 = vcmask 138240
        %358 = vst.msk [vmem:[#allocation2 + $0x18] sm:$0xff] %vm357, 0.0
        %359 = vst.msk [vmem:[#allocation2 + $0x38] sm:$0xff] %vm357, 0.0
        %v360 = vld [vmem:[%s7] ss:$2 sm:$0x3]
        %s361 = scalar_lea.vmem %s7, 1
        %v362 = vld [vmem:[%s361] ss:$2 sm:$0x3]
        %v363 = vld [vmem:[%s6] sm:$0xff]
        %v364 = vld [vmem:[%s2] sm:$0xff]
        %v365 = vld [vmem:[%s2 + $0x8] sm:$0xff]
        %v366 = vld [vmem:[%s2 + $0x10] sm:$0xff]
        %v367 = vld [vmem:[%s2 + $0x18] sm:$0xff]
        %v368 = vld [vmem:[%s353] sm:$0xf]
        %v369 = vld [vmem:[%s3] sm:$0xff]
        %v370 = vld [vmem:[%s3 + $0x8] sm:$0xff]
        %v371 = vld [vmem:[%s3 + $0x10] sm:$0xff]
        %v372 = vld [vmem:[%s3 + $0x18] sm:$0xff]
        %374 = vset.pattern.permute.xlu0 0
        %375 = vperm.xlu0 %374, %v369
        %v376 = vpop.permute.xlu0 %375
        %379 = vset.pattern.permute.xlu0 0
        %380 = vperm.xlu0 %379, %v370
        %v381 = vpop.permute.xlu0 %380
        %384 = vset.pattern.permute.xlu0 0
        %385 = vperm.xlu0 %384, %v371
        %v386 = vpop.permute.xlu0 %385
        %389 = vset.pattern.permute.xlu0 0
        %390 = vperm.xlu0 %389, %v372
        %v391 = vpop.permute.xlu0 %390
        %vm393 = vcmask 31744
        %v395 = vsel %vm393, %v364, 0
        %v398 = vsel %vm393, %v365, 0
        %v401 = vsel %vm393, %v366, 0
        %v404 = vsel %vm393, %v367, 0
        %vm406 = vcmask 1043456
        %v408 = vsel %vm406, %v368, 0
        %410 = vmatprep.subr.mxu0 0.0
        %411 = vmatpush1.msra.mxu0 %v408
        %412 = vmatprep.subr.mxu0 0.0
        %413 = vmatpush1.msra.mxu0 0.0
        %414 = vmatprep.subr.mxu0 0.0
        %415 = vmatpush1.msra.mxu0 0.0
        %416 = vmatprep.subr.mxu0 0.0
        %417 = vmatpush1.msra.mxu0 0.0
        %418 = vmatprep.subr.mxu0 0.0
        %419 = vmatpush1.msra.mxu0 0.0
        %420 = vmatprep.subr.mxu0 0.0
        %421 = vmatpush1.msra.mxu0 0.0
        %422 = vmatprep.subr.mxu0 0.0
        %423 = vmatpush1.msra.mxu0 0.0
        %424 = vmatprep.subr.mxu0 0.0
        %425 = vmatpush1.msra.mxu0 0.0
        %426 = vmatprep.subr.mxu0 0.0
        %427 = vmatpush1.msra.mxu0 0.0
        %428 = vmatprep.subr.mxu0 0.0
        %429 = vmatpush1.msra.mxu0 0.0
        %430 = vmatprep.subr.mxu0 0.0
        %431 = vmatpush1.msra.mxu0 0.0
        %432 = vmatprep.subr.mxu0 0.0
        %433 = vmatpush1.msra.mxu0 0.0
        %434 = vmatprep.subr.mxu0 0.0
        %435 = vmatpush1.msra.mxu0 0.0
        %436 = vmatprep.subr.mxu0 0.0
        %437 = vmatpush1.msra.mxu0 0.0
        %438 = vmatprep.subr.mxu0 0.0
        %439 = vmatpush1.msra.mxu0 0.0
        %440 = vmatprep.subr.mxu0 0.0
        %441 = vmatpush1.msra.mxu0 0.0
        %442 = vmatprep.subr.mxu0 0.0
        %443 = vmatpush1.msra.mxu0 0.0
        %444 = vmatprep.subr.mxu0 0.0
        %445 = vmatpush1.msra.mxu0 0.0
        %446 = vmatprep.subr.mxu0 0.0
        %447 = vmatpush1.msra.mxu0 0.0
        %448 = vmatprep.subr.mxu0 0.0
        %449 = vmatpush1.msra.mxu0 0.0
        %450 = vmatprep.subr.mxu0 0.0
        %451 = vmatpush1.msra.mxu0 0.0
        %452 = vmatprep.subr.mxu0 0.0
        %453 = vmatpush1.msra.mxu0 0.0
        %454 = vmatprep.subr.mxu0 0.0
        %455 = vmatpush1.msra.mxu0 0.0
        %456 = vmatprep.subr.mxu0 0.0
        %457 = vmatpush1.msra.mxu0 0.0
        %458 = vmatprep.subr.mxu0 0.0
        %459 = vmatpush1.msra.mxu0 0.0
        %460 = vmatprep.subr.mxu0 0.0
        %461 = vmatpush1.msra.mxu0 0.0
        %462 = vmatprep.subr.mxu0 0.0
        %463 = vmatpush1.msra.mxu0 0.0
        %464 = vmatprep.subr.mxu0 0.0
        %465 = vmatpush1.msra.mxu0 0.0
        %466 = vmatprep.subr.mxu0 0.0
        %467 = vmatpush1.msra.mxu0 0.0
        %468 = vmatprep.subr.mxu0 0.0
        %469 = vmatpush1.msra.mxu0 0.0
        %470 = vmatprep.subr.mxu0 0.0
        %471 = vmatpush1.msra.mxu0 0.0
        %472 = vmatprep.subr.mxu0 0.0
        %473 = vmatpush1.msra.mxu0 0.0
        %474 = vmatprep.mubr.f32.mxu0 0.0
        %475 = vmatmul.mubr.f32.gmra.mrb[0].mxu0 %v395
        %v476 = vpop.f32.mrb[0].mxu0
        %v477 = vadd.f32 %v376, %v476
        %v478 = vpop.f32.mrb[0].mxu0
        %479 = vmatprep.mubr.f32.mxu0 0.0
        %480 = vmatmul.mubr.f32.gmra.mrb[0].mxu0 %v398
        %v481 = vpop.f32.mrb[0].mxu0
        %v482 = vadd.f32 %v381, %v481
        %v483 = vpop.f32.mrb[0].mxu0
        %484 = vmatprep.mubr.f32.mxu0 0.0
        %485 = vmatmul.mubr.f32.gmra.mrb[0].mxu0 %v401
        %v486 = vpop.f32.mrb[0].mxu0
        %v487 = vadd.f32 %v386, %v486
        %v488 = vpop.f32.mrb[0].mxu0
        %489 = vmatprep.mubr.f32.mxu0 0.0
        %490 = vmatmul.mubr.f32.gmra.mrb[0].mxu0 %v404
        %v491 = vpop.f32.mrb[0].mxu0
        %v492 = vadd.f32 %v391, %v491
        %v493 = vpop.f32.mrb[0].mxu0
        %494 = vdwg.mxu0
        %v495 = vld [vmem:[#allocation6] sm:$0xff]
        %v496 = vld [vmem:[#allocation6 + $0x8] sm:$0xff]
        %v497 = vld [vmem:[#allocation6 + $0x10] sm:$0xff]
        %v498 = vld [vmem:[#allocation6 + $0x18] sm:$0xff]
        %v499 = vld [vmem:[#allocation6 + $0x20] sm:$0xff]
        %v500 = vld [vmem:[#allocation6 + $0x28] sm:$0xff]
        %v501 = vld [vmem:[#allocation6 + $0x30] sm:$0xff]
        %v502 = vld [vmem:[#allocation6 + $0x38] sm:$0xff]
        %v503 = vld [vmem:[#allocation6 + $0x40] sm:$0xff]
        %v504 = vld [vmem:[#allocation6 + $0x48] sm:$0xff]
        %v505 = vld [vmem:[#allocation6 + $0x50] sm:$0xff]
        %v506 = vld [vmem:[#allocation6 + $0x58] sm:$0xff]
        %v507 = vld [vmem:[#allocation6 + $0x60] sm:$0xff]
        %v508 = vld [vmem:[#allocation6 + $0x68] sm:$0xff]
        %v509 = vld [vmem:[#allocation6 + $0x70] sm:$0xff]
        %v510 = vld [vmem:[#allocation6 + $0x78] sm:$0xff]
        %s511 = scalar_lea.vmem [#allocation6], 128
        %v512 = vld [vmem:[%s511] sm:$0xff]
        %v513 = vld [vmem:[%s511 + $0x8] sm:$0xff]
        %v514 = vld [vmem:[%s511 + $0x10] sm:$0xff]
        %v515 = vld [vmem:[%s511 + $0x18] sm:$0xff]
        %v516 = vld [vmem:[%s511 + $0x20] sm:$0xff]
        %v517 = vld [vmem:[%s511 + $0x28] sm:$0xff]
        %v518 = vld [vmem:[%s511 + $0x30] sm:$0xff]
        %v519 = vld [vmem:[%s511 + $0x38] sm:$0xff]
        %v520 = vld [vmem:[%s511 + $0x40] sm:$0xff]
        %v521 = vld [vmem:[%s511 + $0x48] sm:$0xff]
        %v522 = vld [vmem:[%s511 + $0x50] sm:$0xff]
        %v523 = vld [vmem:[%s511 + $0x58] sm:$0xff]
        %v524 = vld [vmem:[%s511 + $0x60] sm:$0xff]
        %v525 = vld [vmem:[%s511 + $0x68] sm:$0xff]
        %v526 = vld [vmem:[%s511 + $0x70] sm:$0xff]
        %v527 = vld [vmem:[%s511 + $0x78] sm:$0xff]
        %vm528 = vcmask 523264
        %v530 = vsel %vm528, %v482, 0
        %532 = vmatprep.subr.mxu0 %v513
        %533 = vmatpush1.msra.mxu0 %v512
        %534 = vmatprep.subr.mxu0 %v515
        %535 = vmatpush1.msra.mxu0 %v514
        %536 = vmatprep.subr.mxu0 %v517
        %537 = vmatpush1.msra.mxu0 %v516
        %538 = vmatprep.subr.mxu0 %v519
        %539 = vmatpush1.msra.mxu0 %v518
        %540 = vmatprep.subr.mxu0 %v521
        %541 = vmatpush1.msra.mxu0 %v520
        %542 = vmatprep.subr.mxu0 %v523
        %543 = vmatpush1.msra.mxu0 %v522
        %544 = vmatprep.subr.mxu0 %v525
        %545 = vmatpush1.msra.mxu0 %v524
        %546 = vmatprep.subr.mxu0 %v527
        %547 = vmatpush1.msra.mxu0 %v526
        %548 = vmatprep.subr.mxu0 0.0
        %549 = vmatpush1.msra.mxu0 0.0
        %550 = vmatprep.subr.mxu0 0.0
        %551 = vmatpush1.msra.mxu0 0.0
        %552 = vmatprep.subr.mxu0 0.0
        %553 = vmatpush1.msra.mxu0 0.0
        %554 = vmatprep.subr.mxu0 0.0
        %555 = vmatpush1.msra.mxu0 0.0
        %556 = vmatprep.subr.mxu0 0.0
        %557 = vmatpush1.msra.mxu0 0.0
        %558 = vmatprep.subr.mxu0 0.0
        %559 = vmatpush1.msra.mxu0 0.0
        %560 = vmatprep.subr.mxu0 0.0
        %561 = vmatpush1.msra.mxu0 0.0
        %562 = vmatprep.subr.mxu0 0.0
        %563 = vmatpush1.msra.mxu0 0.0
        %564 = vmatprep.subr.mxu0 0.0
        %565 = vmatpush1.msra.mxu0 0.0
        %566 = vmatprep.subr.mxu0 0.0
        %567 = vmatpush1.msra.mxu0 0.0
        %568 = vmatprep.subr.mxu0 0.0
        %569 = vmatpush1.msra.mxu0 0.0
        %570 = vmatprep.subr.mxu0 0.0
        %571 = vmatpush1.msra.mxu0 0.0
        %572 = vmatprep.subr.mxu0 0.0
        %573 = vmatpush1.msra.mxu0 0.0
        %574 = vmatprep.subr.mxu0 0.0
        %575 = vmatpush1.msra.mxu0 0.0
        %576 = vmatprep.subr.mxu0 0.0
        %577 = vmatpush1.msra.mxu0 0.0
        %578 = vmatprep.subr.mxu0 0.0
        %579 = vmatpush1.msra.mxu0 0.0
        %580 = vmatprep.subr.mxu0 0.0
        %581 = vmatpush1.msra.mxu0 0.0
        %582 = vmatprep.subr.mxu0 0.0
        %583 = vmatpush1.msra.mxu0 0.0
        %584 = vmatprep.subr.mxu0 0.0
        %585 = vmatpush1.msra.mxu0 0.0
        %586 = vmatprep.subr.mxu0 0.0
        %587 = vmatpush1.msra.mxu0 0.0
        %588 = vmatprep.subr.mxu0 0.0
        %589 = vmatpush1.msra.mxu0 0.0
        %590 = vmatprep.subr.mxu0 0.0
        %591 = vmatpush1.msra.mxu0 0.0
        %592 = vmatprep.subr.mxu0 0.0
        %593 = vmatpush1.msra.mxu0 0.0
        %594 = vmatprep.subr.mxu0 0.0
        %595 = vmatpush1.msra.mxu0 0.0
        %596 = vmatprep.mubr.f32.mxu0 0.0
        %597 = vmatmul.mubr.f32.gmra.mrb[0].mxu0 %v530
        %v598 = vpop.f32.mrb[0].mxu0
        %v599 = vadd.f32 0.0, %v598
        %v600 = vpop.f32.mrb[0].mxu0
        %v601 = vadd.f32 0.0, %v600
        %602 = vdwg.mxu0
        %v604 = vsel %vm528, %v477, 0
        %606 = vmatprep.subr.mxu0 %v496
        %607 = vmatpush1.msra.mxu0 %v495
        %608 = vmatprep.subr.mxu0 %v498
        %609 = vmatpush1.msra.mxu0 %v497
        %610 = vmatprep.subr.mxu0 %v500
        %611 = vmatpush1.msra.mxu0 %v499
        %612 = vmatprep.subr.mxu0 %v502
        %613 = vmatpush1.msra.mxu0 %v501
        %614 = vmatprep.subr.mxu0 %v504
        %615 = vmatpush1.msra.mxu0 %v503
        %616 = vmatprep.subr.mxu0 %v506
        %617 = vmatpush1.msra.mxu0 %v505
        %618 = vmatprep.subr.mxu0 %v508
        %619 = vmatpush1.msra.mxu0 %v507
        %620 = vmatprep.subr.mxu0 %v510
        %621 = vmatpush1.msra.mxu0 %v509
        %622 = vmatprep.subr.mxu0 0.0
        %623 = vmatpush1.msra.mxu0 0.0
        %624 = vmatprep.subr.mxu0 0.0
        %625 = vmatpush1.msra.mxu0 0.0
        %626 = vmatprep.subr.mxu0 0.0
        %627 = vmatpush1.msra.mxu0 0.0
        %628 = vmatprep.subr.mxu0 0.0
        %629 = vmatpush1.msra.mxu0 0.0
        %630 = vmatprep.subr.mxu0 0.0
        %631 = vmatpush1.msra.mxu0 0.0
        %632 = vmatprep.subr.mxu0 0.0
        %633 = vmatpush1.msra.mxu0 0.0
        %634 = vmatprep.subr.mxu0 0.0
        %635 = vmatpush1.msra.mxu0 0.0
        %636 = vmatprep.subr.mxu0 0.0
        %637 = vmatpush1.msra.mxu0 0.0
        %638 = vmatprep.subr.mxu0 0.0
        %639 = vmatpush1.msra.mxu0 0.0
        %640 = vmatprep.subr.mxu0 0.0
        %641 = vmatpush1.msra.mxu0 0.0
        %642 = vmatprep.subr.mxu0 0.0
        %643 = vmatpush1.msra.mxu0 0.0
        %644 = vmatprep.subr.mxu0 0.0
        %645 = vmatpush1.msra.mxu0 0.0
        %646 = vmatprep.subr.mxu0 0.0
        %647 = vmatpush1.msra.mxu0 0.0
        %648 = vmatprep.subr.mxu0 0.0
        %649 = vmatpush1.msra.mxu0 0.0
        %650 = vmatprep.subr.mxu0 0.0
        %651 = vmatpush1.msra.mxu0 0.0
        %652 = vmatprep.subr.mxu0 0.0
        %653 = vmatpush1.msra.mxu0 0.0
        %654 = vmatprep.subr.mxu0 0.0
        %655 = vmatpush1.msra.mxu0 0.0
        %656 = vmatprep.subr.mxu0 0.0
        %657 = vmatpush1.msra.mxu0 0.0
        %658 = vmatprep.subr.mxu0 0.0
        %659 = vmatpush1.msra.mxu0 0.0
        %660 = vmatprep.subr.mxu0 0.0
        %661 = vmatpush1.msra.mxu0 0.0
        %662 = vmatprep.subr.mxu0 0.0
        %663 = vmatpush1.msra.mxu0 0.0
        %664 = vmatprep.subr.mxu0 0.0
        %665 = vmatpush1.msra.mxu0 0.0
        %666 = vmatprep.subr.mxu0 0.0
        %667 = vmatpush1.msra.mxu0 0.0
        %668 = vmatprep.subr.mxu0 0.0
        %669 = vmatpush1.msra.mxu0 0.0
        %670 = vmatprep.mubr.f32.mxu0 0.0
        %671 = vmatmul.mubr.f32.gmra.mrb[0].mxu0 %v604
        %v672 = vpop.f32.mrb[0].mxu0
        %v673 = vadd.f32 %v599, %v672
        %v674 = vpop.f32.mrb[0].mxu0
        %v675 = vadd.f32 %v601, %v674
        %676 = vdwg.mxu0
        %s677 = scalar_lea.vmem [#allocation6], 256
        %v678 = vld [vmem:[%s677] sm:$0xff]
        %v679 = vld [vmem:[%s677 + $0x8] sm:$0xff]
        %v680 = vld [vmem:[%s677 + $0x10] sm:$0xff]
        %v681 = vld [vmem:[%s677 + $0x18] sm:$0xff]
        %v682 = vld [vmem:[%s677 + $0x20] sm:$0xff]
        %v683 = vld [vmem:[%s677 + $0x28] sm:$0xff]
        %v684 = vld [vmem:[%s677 + $0x30] sm:$0xff]
        %v685 = vld [vmem:[%s677 + $0x38] sm:$0xff]
        %v686 = vld [vmem:[%s677 + $0x40] sm:$0xff]
        %v687 = vld [vmem:[%s677 + $0x48] sm:$0xff]
        %v688 = vld [vmem:[%s677 + $0x50] sm:$0xff]
        %v689 = vld [vmem:[%s677 + $0x58] sm:$0xff]
        %v690 = vld [vmem:[%s677 + $0x60] sm:$0xff]
        %v691 = vld [vmem:[%s677 + $0x68] sm:$0xff]
        %v692 = vld [vmem:[%s677 + $0x70] sm:$0xff]
        %v693 = vld [vmem:[%s677 + $0x78] sm:$0xff]
        %v695 = vsel %vm528, %v487, 0
        %697 = vmatprep.subr.mxu0 %v679
        %698 = vmatpush1.msra.mxu0 %v678
        %699 = vmatprep.subr.mxu0 %v681
        %700 = vmatpush1.msra.mxu0 %v680
        %701 = vmatprep.subr.mxu0 %v683
        %702 = vmatpush1.msra.mxu0 %v682
        %703 = vmatprep.subr.mxu0 %v685
        %704 = vmatpush1.msra.mxu0 %v684
        %705 = vmatprep.subr.mxu0 %v687
        %706 = vmatpush1.msra.mxu0 %v686
        %707 = vmatprep.subr.mxu0 %v689
        %708 = vmatpush1.msra.mxu0 %v688
        %709 = vmatprep.subr.mxu0 %v691
        %710 = vmatpush1.msra.mxu0 %v690
        %711 = vmatprep.subr.mxu0 %v693
        %712 = vmatpush1.msra.mxu0 %v692
        %713 = vmatprep.subr.mxu0 0.0
        %714 = vmatpush1.msra.mxu0 0.0
        %715 = vmatprep.subr.mxu0 0.0
        %716 = vmatpush1.msra.mxu0 0.0
        %717 = vmatprep.subr.mxu0 0.0
        %718 = vmatpush1.msra.mxu0 0.0
        %719 = vmatprep.subr.mxu0 0.0
        %720 = vmatpush1.msra.mxu0 0.0
        %721 = vmatprep.subr.mxu0 0.0
        %722 = vmatpush1.msra.mxu0 0.0
        %723 = vmatprep.subr.mxu0 0.0
        %724 = vmatpush1.msra.mxu0 0.0
        %725 = vmatprep.subr.mxu0 0.0
        %726 = vmatpush1.msra.mxu0 0.0
        %727 = vmatprep.subr.mxu0 0.0
        %728 = vmatpush1.msra.mxu0 0.0
        %729 = vmatprep.subr.mxu0 0.0
        %730 = vmatpush1.msra.mxu0 0.0
        %731 = vmatprep.subr.mxu0 0.0
        %732 = vmatpush1.msra.mxu0 0.0
        %733 = vmatprep.subr.mxu0 0.0
        %734 = vmatpush1.msra.mxu0 0.0
        %735 = vmatprep.subr.mxu0 0.0
        %736 = vmatpush1.msra.mxu0 0.0
        %737 = vmatprep.subr.mxu0 0.0
        %738 = vmatpush1.msra.mxu0 0.0
        %739 = vmatprep.subr.mxu0 0.0
        %740 = vmatpush1.msra.mxu0 0.0
        %741 = vmatprep.subr.mxu0 0.0
        %742 = vmatpush1.msra.mxu0 0.0
        %743 = vmatprep.subr.mxu0 0.0
        %744 = vmatpush1.msra.mxu0 0.0
        %745 = vmatprep.subr.mxu0 0.0
        %746 = vmatpush1.msra.mxu0 0.0
        %747 = vmatprep.subr.mxu0 0.0
        %748 = vmatpush1.msra.mxu0 0.0
        %749 = vmatprep.subr.mxu0 0.0
        %750 = vmatpush1.msra.mxu0 0.0
        %751 = vmatprep.subr.mxu0 0.0
        %752 = vmatpush1.msra.mxu0 0.0
        %753 = vmatprep.subr.mxu0 0.0
        %754 = vmatpush1.msra.mxu0 0.0
        %755 = vmatprep.subr.mxu0 0.0
        %756 = vmatpush1.msra.mxu0 0.0
        %757 = vmatprep.subr.mxu0 0.0
        %758 = vmatpush1.msra.mxu0 0.0
        %759 = vmatprep.subr.mxu0 0.0
        %760 = vmatpush1.msra.mxu0 0.0
        %761 = vmatprep.mubr.f32.mxu0 0.0
        %762 = vmatmul.mubr.f32.gmra.mrb[0].mxu0 %v695
        %v763 = vpop.f32.mrb[0].mxu0
        %v764 = vadd.f32 0.0, %v763
        %v765 = vpop.f32.mrb[0].mxu0
        %v766 = vadd.f32 0.0, %v765
        %767 = vdwg.mxu0
        %v768 = vadd.f32 %v673, %v764
        %v769 = vadd.f32 %v675, %v766
        %s770 = scalar_lea.vmem [#allocation6], 384
        %v771 = vld [vmem:[%s770] sm:$0xff]
        %v772 = vld [vmem:[%s770 + $0x8] sm:$0xff]
        %v773 = vld [vmem:[%s770 + $0x10] sm:$0xff]
        %v774 = vld [vmem:[%s770 + $0x18] sm:$0xff]
        %v775 = vld [vmem:[%s770 + $0x20] sm:$0xff]
        %v776 = vld [vmem:[%s770 + $0x28] sm:$0xff]
        %v777 = vld [vmem:[%s770 + $0x30] sm:$0xff]
        %v778 = vld [vmem:[%s770 + $0x38] sm:$0xff]
        %v779 = vld [vmem:[%s770 + $0x40] sm:$0xff]
        %v780 = vld [vmem:[%s770 + $0x48] sm:$0xff]
        %v781 = vld [vmem:[%s770 + $0x50] sm:$0xff]
        %v782 = vld [vmem:[%s770 + $0x58] sm:$0xff]
        %v783 = vld [vmem:[%s770 + $0x60] sm:$0xff]
        %v784 = vld [vmem:[%s770 + $0x68] sm:$0xff]
        %v785 = vld [vmem:[%s770 + $0x70] sm:$0xff]
        %v786 = vld [vmem:[%s770 + $0x78] sm:$0xff]
        %v788 = vsel %vm528, %v492, 0
        %790 = vmatprep.subr.mxu0 %v772
        %791 = vmatpush1.msra.mxu0 %v771
        %792 = vmatprep.subr.mxu0 %v774
        %793 = vmatpush1.msra.mxu0 %v773
        %794 = vmatprep.subr.mxu0 %v776
        %795 = vmatpush1.msra.mxu0 %v775
        %796 = vmatprep.subr.mxu0 %v778
        %797 = vmatpush1.msra.mxu0 %v777
        %798 = vmatprep.subr.mxu0 %v780
        %799 = vmatpush1.msra.mxu0 %v779
        %800 = vmatprep.subr.mxu0 %v782
        %801 = vmatpush1.msra.mxu0 %v781
        %802 = vmatprep.subr.mxu0 %v784
        %803 = vmatpush1.msra.mxu0 %v783
        %804 = vmatprep.subr.mxu0 %v786
        %805 = vmatpush1.msra.mxu0 %v785
        %806 = vmatprep.subr.mxu0 0.0
        %807 = vmatpush1.msra.mxu0 0.0
        %808 = vmatprep.subr.mxu0 0.0
        %809 = vmatpush1.msra.mxu0 0.0
        %810 = vmatprep.subr.mxu0 0.0
        %811 = vmatpush1.msra.mxu0 0.0
        %812 = vmatprep.subr.mxu0 0.0
        %813 = vmatpush1.msra.mxu0 0.0
        %814 = vmatprep.subr.mxu0 0.0
        %815 = vmatpush1.msra.mxu0 0.0
        %816 = vmatprep.subr.mxu0 0.0
        %817 = vmatpush1.msra.mxu0 0.0
        %818 = vmatprep.subr.mxu0 0.0
        %819 = vmatpush1.msra.mxu0 0.0
        %820 = vmatprep.subr.mxu0 0.0
        %821 = vmatpush1.msra.mxu0 0.0
        %822 = vmatprep.subr.mxu0 0.0
        %823 = vmatpush1.msra.mxu0 0.0
        %824 = vmatprep.subr.mxu0 0.0
        %825 = vmatpush1.msra.mxu0 0.0
        %826 = vmatprep.subr.mxu0 0.0
        %827 = vmatpush1.msra.mxu0 0.0
        %828 = vmatprep.subr.mxu0 0.0
        %829 = vmatpush1.msra.mxu0 0.0
        %830 = vmatprep.subr.mxu0 0.0
        %831 = vmatpush1.msra.mxu0 0.0
        %832 = vmatprep.subr.mxu0 0.0
        %833 = vmatpush1.msra.mxu0 0.0
        %834 = vmatprep.subr.mxu0 0.0
        %835 = vmatpush1.msra.mxu0 0.0
        %836 = vmatprep.subr.mxu0 0.0
        %837 = vmatpush1.msra.mxu0 0.0
        %838 = vmatprep.subr.mxu0 0.0
        %839 = vmatpush1.msra.mxu0 0.0
        %840 = vmatprep.subr.mxu0 0.0
        %841 = vmatpush1.msra.mxu0 0.0
        %842 = vmatprep.subr.mxu0 0.0
        %843 = vmatpush1.msra.mxu0 0.0
        %844 = vmatprep.subr.mxu0 0.0
        %845 = vmatpush1.msra.mxu0 0.0
        %846 = vmatprep.subr.mxu0 0.0
        %847 = vmatpush1.msra.mxu0 0.0
        %848 = vmatprep.subr.mxu0 0.0
        %849 = vmatpush1.msra.mxu0 0.0
        %850 = vmatprep.subr.mxu0 0.0
        %851 = vmatpush1.msra.mxu0 0.0
        %852 = vmatprep.subr.mxu0 0.0
        %853 = vmatpush1.msra.mxu0 0.0
        %854 = vmatprep.mubr.f32.mxu0 0.0
        %855 = vmatmul.mubr.f32.gmra.mrb[0].mxu0 %v788
        %v856 = vpop.f32.mrb[0].mxu0
        %v857 = vadd.f32 0.0, %v856
        %v858 = vpop.f32.mrb[0].mxu0
        %v859 = vadd.f32 0.0, %v858
        %860 = vdwg.mxu0
        %v861 = vadd.f32 %v768, %v857
        %v862 = vadd.f32 %v769, %v859
        %863 = vst [vmem:[#allocation2 + $0x8] sm:$0xff] %v861
        %864 = vst [vmem:[#allocation2 + $0x10] sm:$0xff] %v862
        %v865 = vld [vmem:[%s309] sm:$0xff]
        %v866 = vld [vmem:[%s309 + $0x8] sm:$0xff]
        %867 = vst [vmem:[#allocation2 + $0x28] sm:$0xff] %v865
        %868 = vst [vmem:[#allocation2 + $0x30] sm:$0xff] %v866
        %v869 = vld [vmem:[%s5] sm:$0xff]
        %v870 = vld [vmem:[#allocation2] sm:$0xff]
        %v871 = vld [vmem:[#allocation2 + $0x8] sm:$0xff]
        %v872 = vld [vmem:[#allocation2 + $0x10] sm:$0xff]
        %v873 = vld [vmem:[#allocation2 + $0x20] sm:$0xff]
        %v874 = vld [vmem:[#allocation2 + $0x28] sm:$0xff]
        %v875 = vld [vmem:[#allocation2 + $0x30] sm:$0xff]
        %s876 = scalar_lea.vmem %s5, 8
        %v877 = vld [vmem:[%s876] sm:$0xff]
        %s878 = scalar_lea.vmem %s5, 16
        %v879 = vld [vmem:[%s878] sm:$0xff]
        %s880 = scalar_lea.vmem %s5, 24
        %v881 = vld [vmem:[%s880] sm:$0xff]
        %888 = vrot.lane.b32.xlu0 %v870, 1
        %v889 = vpop.permute.xlu0 %888
        %890 = vrot.lane.b32.xlu0 %v871, 1
        %v891 = vpop.permute.xlu0 %890
        %892 = vrot.lane.b32.xlu0 %v872, 1
        %v893 = vpop.permute.xlu0 %892
        %894 = vrot.lane.b32.xlu0 %v873, 1
        %v895 = vpop.permute.xlu0 %894
        %896 = vrot.lane.b32.xlu0 %v874, 1
        %v897 = vpop.permute.xlu0 %896
        %898 = vrot.lane.b32.xlu0 %v875, 1
        %v899 = vpop.permute.xlu0 %898
        %vm900 = vcmask 7168
        %v901 = vsel %vm900, %v889, %v891
        %v902 = vsel %vm900, %v891, %v893
        %v903 = vsel %vm900, %v895, %v897
        %v904 = vsel %vm900, %v897, %v899
        %vm909 = vcmask 130048
        %v911 = vsel %vm909, %v881, 0
        %913 = vmatprep.subr.mxu0 %v902
        %914 = vmatpush1.msra.mxu0 %v901
        %915 = vmatprep.subr.mxu0 %v904
        %916 = vmatpush1.msra.mxu0 %v903
        %917 = vmatprep.subr.mxu0 0.0
        %918 = vmatpush1.msra.mxu0 0.0
        %919 = vmatprep.subr.mxu0 0.0
        %920 = vmatpush1.msra.mxu0 0.0
        %921 = vmatprep.subr.mxu0 0.0
        %922 = vmatpush1.msra.mxu0 0.0
        %923 = vmatprep.subr.mxu0 0.0
        %924 = vmatpush1.msra.mxu0 0.0
        %925 = vmatprep.subr.mxu0 0.0
        %926 = vmatpush1.msra.mxu0 0.0
        %927 = vmatprep.subr.mxu0 0.0
        %928 = vmatpush1.msra.mxu0 0.0
        %929 = vmatprep.subr.mxu0 0.0
        %930 = vmatpush1.msra.mxu0 0.0
        %931 = vmatprep.subr.mxu0 0.0
        %932 = vmatpush1.msra.mxu0 0.0
        %933 = vmatprep.subr.mxu0 0.0
        %934 = vmatpush1.msra.mxu0 0.0
        %935 = vmatprep.subr.mxu0 0.0
        %936 = vmatpush1.msra.mxu0 0.0
        %937 = vmatprep.subr.mxu0 0.0
        %938 = vmatpush1.msra.mxu0 0.0
        %939 = vmatprep.subr.mxu0 0.0
        %940 = vmatpush1.msra.mxu0 0.0
        %941 = vmatprep.subr.mxu0 0.0
        %942 = vmatpush1.msra.mxu0 0.0
        %943 = vmatprep.subr.mxu0 0.0
        %944 = vmatpush1.msra.mxu0 0.0
        %945 = vmatprep.subr.mxu0 0.0
        %946 = vmatpush1.msra.mxu0 0.0
        %947 = vmatprep.subr.mxu0 0.0
        %948 = vmatpush1.msra.mxu0 0.0
        %949 = vmatprep.subr.mxu0 0.0
        %950 = vmatpush1.msra.mxu0 0.0
        %951 = vmatprep.subr.mxu0 0.0
        %952 = vmatpush1.msra.mxu0 0.0
        %953 = vmatprep.subr.mxu0 0.0
        %954 = vmatpush1.msra.mxu0 0.0
        %955 = vmatprep.subr.mxu0 0.0
        %956 = vmatpush1.msra.mxu0 0.0
        %957 = vmatprep.subr.mxu0 0.0
        %958 = vmatpush1.msra.mxu0 0.0
        %959 = vmatprep.subr.mxu0 0.0
        %960 = vmatpush1.msra.mxu0 0.0
        %961 = vmatprep.subr.mxu0 0.0
        %962 = vmatpush1.msra.mxu0 0.0
        %963 = vmatprep.subr.mxu0 0.0
        %964 = vmatpush1.msra.mxu0 0.0
        %965 = vmatprep.subr.mxu0 0.0
        %966 = vmatpush1.msra.mxu0 0.0
        %967 = vmatprep.subr.mxu0 0.0
        %968 = vmatpush1.msra.mxu0 0.0
        %969 = vmatprep.subr.mxu0 0.0
        %970 = vmatpush1.msra.mxu0 0.0
        %971 = vmatprep.subr.mxu0 0.0
        %972 = vmatpush1.msra.mxu0 0.0
        %973 = vmatprep.subr.mxu0 0.0
        %974 = vmatpush1.msra.mxu0 0.0
        %975 = vmatprep.subr.mxu0 0.0
        %976 = vmatpush1.msra.mxu0 0.0
        %977 = vmatprep.mubr.f32.mxu0 0.0
        %978 = vmatmul.mubr.f32.gmra.mrb[0].mxu0 %v911
        %v979 = vpop.f32.mrb[0].mxu0
        %v980 = vadd.f32 0.0, %v979
        %v981 = vpop.f32.mrb[0].mxu0
        %v982 = vadd.f32 0.0, %v981
        %983 = vdwg.mxu0
        %s984 = scalar_lea.vmem %s5, 32
        %v985 = vld [vmem:[%s984] sm:$0xff]
        %v987 = vsel %vm909, %v985, 0
        %989 = vmatprep.subr.mxu0 %v872
        %990 = vmatpush1.msra.mxu0 %v871
        %991 = vmatprep.subr.mxu0 %v875
        %992 = vmatpush1.msra.mxu0 %v874
        %993 = vmatprep.subr.mxu0 0.0
        %994 = vmatpush1.msra.mxu0 0.0
        %995 = vmatprep.subr.mxu0 0.0
        %996 = vmatpush1.msra.mxu0 0.0
        %997 = vmatprep.subr.mxu0 0.0
        %998 = vmatpush1.msra.mxu0 0.0
        %999 = vmatprep.subr.mxu0 0.0
        %1000 = vmatpush1.msra.mxu0 0.0
        %1001 = vmatprep.subr.mxu0 0.0
        %1002 = vmatpush1.msra.mxu0 0.0
        %1003 = vmatprep.subr.mxu0 0.0
        %1004 = vmatpush1.msra.mxu0 0.0
        %1005 = vmatprep.subr.mxu0 0.0
        %1006 = vmatpush1.msra.mxu0 0.0
        %1007 = vmatprep.subr.mxu0 0.0
        %1008 = vmatpush1.msra.mxu0 0.0
        %1009 = vmatprep.subr.mxu0 0.0
        %1010 = vmatpush1.msra.mxu0 0.0
        %1011 = vmatprep.subr.mxu0 0.0
        %1012 = vmatpush1.msra.mxu0 0.0
        %1013 = vmatprep.subr.mxu0 0.0
        %1014 = vmatpush1.msra.mxu0 0.0
        %1015 = vmatprep.subr.mxu0 0.0
        %1016 = vmatpush1.msra.mxu0 0.0
        %1017 = vmatprep.subr.mxu0 0.0
        %1018 = vmatpush1.msra.mxu0 0.0
        %1019 = vmatprep.subr.mxu0 0.0
        %1020 = vmatpush1.msra.mxu0 0.0
        %1021 = vmatprep.subr.mxu0 0.0
        %1022 = vmatpush1.msra.mxu0 0.0
        %1023 = vmatprep.subr.mxu0 0.0
        %1024 = vmatpush1.msra.mxu0 0.0
        %1025 = vmatprep.subr.mxu0 0.0
        %1026 = vmatpush1.msra.mxu0 0.0
        %1027 = vmatprep.subr.mxu0 0.0
        %1028 = vmatpush1.msra.mxu0 0.0
        %1029 = vmatprep.subr.mxu0 0.0
        %1030 = vmatpush1.msra.mxu0 0.0
        %1031 = vmatprep.subr.mxu0 0.0
        %1032 = vmatpush1.msra.mxu0 0.0
        %1033 = vmatprep.subr.mxu0 0.0
        %1034 = vmatpush1.msra.mxu0 0.0
        %1035 = vmatprep.subr.mxu0 0.0
        %1036 = vmatpush1.msra.mxu0 0.0
        %1037 = vmatprep.subr.mxu0 0.0
        %1038 = vmatpush1.msra.mxu0 0.0
        %1039 = vmatprep.subr.mxu0 0.0
        %1040 = vmatpush1.msra.mxu0 0.0
        %1041 = vmatprep.subr.mxu0 0.0
        %1042 = vmatpush1.msra.mxu0 0.0
        %1043 = vmatprep.subr.mxu0 0.0
        %1044 = vmatpush1.msra.mxu0 0.0
        %1045 = vmatprep.subr.mxu0 0.0
        %1046 = vmatpush1.msra.mxu0 0.0
        %1047 = vmatprep.subr.mxu0 0.0
        %1048 = vmatpush1.msra.mxu0 0.0
        %1049 = vmatprep.subr.mxu0 0.0
        %1050 = vmatpush1.msra.mxu0 0.0
        %1051 = vmatprep.subr.mxu0 0.0
        %1052 = vmatpush1.msra.mxu0 0.0
        %1053 = vmatprep.mubr.f32.mxu0 0.0
        %1054 = vmatmul.mubr.f32.gmra.mrb[0].mxu0 %v987
        %v1055 = vpop.f32.mrb[0].mxu0
        %v1056 = vadd.f32 0.0, %v1055
        %v1057 = vpop.f32.mrb[0].mxu0
        %v1058 = vadd.f32 0.0, %v1057
        %1059 = vdwg.mxu0
        %s1060 = scalar_lea.vmem %s5, 40
        %v1061 = vld [vmem:[%s1060] sm:$0xff]
        %v1062 = vld [vmem:[#allocation2 + $0x8] sm:$0xff]
        %v1063 = vld [vmem:[#allocation2 + $0x10] sm:$0xff]
        %v1064 = vld [vmem:[#allocation2 + $0x18] sm:$0xff]
        %v1065 = vld [vmem:[#allocation2 + $0x28] sm:$0xff]
        %v1066 = vld [vmem:[#allocation2 + $0x30] sm:$0xff]
        %v1067 = vld [vmem:[#allocation2 + $0x38] sm:$0xff]
        %1074 = vrot.lane.b32.xlu0 %v1062, 127
        %v1075 = vpop.permute.xlu0 %1074
        %1076 = vrot.lane.b32.xlu0 %v1063, 127
        %v1077 = vpop.permute.xlu0 %1076
        %1078 = vrot.lane.b32.xlu0 %v1064, 127
        %v1079 = vpop.permute.xlu0 %1078
        %1080 = vrot.lane.b32.xlu0 %v1065, 127
        %v1081 = vpop.permute.xlu0 %1080
        %1082 = vrot.lane.b32.xlu0 %v1066, 127
        %v1083 = vpop.permute.xlu0 %1082
        %1084 = vrot.lane.b32.xlu0 %v1067, 127
        %v1085 = vpop.permute.xlu0 %1084
        %vm1086 = vcmask 1039360
        %v1087 = vsel %vm1086, %v1075, %v1077
        %v1088 = vsel %vm1086, %v1077, %v1079
        %v1089 = vsel %vm1086, %v1081, %v1083
        %v1090 = vsel %vm1086, %v1083, %v1085
        %v1096 = vsel %vm909, %v1061, 0
        %1098 = vmatprep.subr.mxu0 %v1088
        %1099 = vmatpush1.msra.mxu0 %v1087
        %1100 = vmatprep.subr.mxu0 %v1090
        %1101 = vmatpush1.msra.mxu0 %v1089
        %1102 = vmatprep.subr.mxu0 0.0
        %1103 = vmatpush1.msra.mxu0 0.0
        %1104 = vmatprep.subr.mxu0 0.0
        %1105 = vmatpush1.msra.mxu0 0.0
        %1106 = vmatprep.subr.mxu0 0.0
        %1107 = vmatpush1.msra.mxu0 0.0
        %1108 = vmatprep.subr.mxu0 0.0
        %1109 = vmatpush1.msra.mxu0 0.0
        %1110 = vmatprep.subr.mxu0 0.0
        %1111 = vmatpush1.msra.mxu0 0.0
        %1112 = vmatprep.subr.mxu0 0.0
        %1113 = vmatpush1.msra.mxu0 0.0
        %1114 = vmatprep.subr.mxu0 0.0
        %1115 = vmatpush1.msra.mxu0 0.0
        %1116 = vmatprep.subr.mxu0 0.0
        %1117 = vmatpush1.msra.mxu0 0.0
        %1118 = vmatprep.subr.mxu0 0.0
        %1119 = vmatpush1.msra.mxu0 0.0
        %1120 = vmatprep.subr.mxu0 0.0
        %1121 = vmatpush1.msra.mxu0 0.0
        %1122 = vmatprep.subr.mxu0 0.0
        %1123 = vmatpush1.msra.mxu0 0.0
        %1124 = vmatprep.subr.mxu0 0.0
        %1125 = vmatpush1.msra.mxu0 0.0
        %1126 = vmatprep.subr.mxu0 0.0
        %1127 = vmatpush1.msra.mxu0 0.0
        %1128 = vmatprep.subr.mxu0 0.0
        %1129 = vmatpush1.msra.mxu0 0.0
        %1130 = vmatprep.subr.mxu0 0.0
        %1131 = vmatpush1.msra.mxu0 0.0
        %1132 = vmatprep.subr.mxu0 0.0
        %1133 = vmatpush1.msra.mxu0 0.0
        %1134 = vmatprep.subr.mxu0 0.0
        %1135 = vmatpush1.msra.mxu0 0.0
        %1136 = vmatprep.subr.mxu0 0.0
        %1137 = vmatpush1.msra.mxu0 0.0
        %1138 = vmatprep.subr.mxu0 0.0
        %1139 = vmatpush1.msra.mxu0 0.0
        %1140 = vmatprep.subr.mxu0 0.0
        %1141 = vmatpush1.msra.mxu0 0.0
        %1142 = vmatprep.subr.mxu0 0.0
        %1143 = vmatpush1.msra.mxu0 0.0
        %1144 = vmatprep.subr.mxu0 0.0
        %1145 = vmatpush1.msra.mxu0 0.0
        %1146 = vmatprep.subr.mxu0 0.0
        %1147 = vmatpush1.msra.mxu0 0.0
        %1148 = vmatprep.subr.mxu0 0.0
        %1149 = vmatpush1.msra.mxu0 0.0
        %1150 = vmatprep.subr.mxu0 0.0
        %1151 = vmatpush1.msra.mxu0 0.0
        %1152 = vmatprep.subr.mxu0 0.0
        %1153 = vmatpush1.msra.mxu0 0.0
        %1154 = vmatprep.subr.mxu0 0.0
        %1155 = vmatpush1.msra.mxu0 0.0
        %1156 = vmatprep.subr.mxu0 0.0
        %1157 = vmatpush1.msra.mxu0 0.0
        %1158 = vmatprep.subr.mxu0 0.0
        %1159 = vmatpush1.msra.mxu0 0.0
        %1160 = vmatprep.subr.mxu0 0.0
        %1161 = vmatpush1.msra.mxu0 0.0
        %1162 = vmatprep.mubr.f32.mxu0 0.0
        %1163 = vmatmul.mubr.f32.gmra.mrb[0].mxu0 %v1096
        %v1164 = vpop.f32.mrb[0].mxu0
        %v1165 = vadd.f32 0.0, %v1164
        %v1166 = vpop.f32.mrb[0].mxu0
        %v1167 = vadd.f32 0.0, %v1166
        %1168 = vdwg.mxu0
        %1169 = vrot.lane.b32.xlu0 %v870, 17
        %v1170 = vpop.permute.xlu0 %1169
        %1171 = vrot.lane.b32.xlu0 %v871, 17
        %v1172 = vpop.permute.xlu0 %1171
        %1173 = vrot.lane.b32.xlu0 %v872, 17
        %v1174 = vpop.permute.xlu0 %1173
        %1175 = vrot.lane.b32.xlu0 %v873, 17
        %v1176 = vpop.permute.xlu0 %1175
        %1177 = vrot.lane.b32.xlu0 %v874, 17
        %v1178 = vpop.permute.xlu0 %1177
        %1179 = vrot.lane.b32.xlu0 %v875, 17
        %v1180 = vpop.permute.xlu0 %1179
        %v1181 = vsel %vm357, %v1170, %v1172
        %v1182 = vsel %vm357, %v1172, %v1174
        %v1183 = vsel %vm357, %v1176, %v1178
        %v1184 = vsel %vm357, %v1178, %v1180
        %v1190 = vsel %vm909, %v869, 0
        %1192 = vmatprep.subr.mxu0 %v1182
        %1193 = vmatpush1.msra.mxu0 %v1181
        %1194 = vmatprep.subr.mxu0 %v1184
        %1195 = vmatpush1.msra.mxu0 %v1183
        %1196 = vmatprep.subr.mxu0 0.0
        %1197 = vmatpush1.msra.mxu0 0.0
        %1198 = vmatprep.subr.mxu0 0.0
        %1199 = vmatpush1.msra.mxu0 0.0
        %1200 = vmatprep.subr.mxu0 0.0
        %1201 = vmatpush1.msra.mxu0 0.0
        %1202 = vmatprep.subr.mxu0 0.0
        %1203 = vmatpush1.msra.mxu0 0.0
        %1204 = vmatprep.subr.mxu0 0.0
        %1205 = vmatpush1.msra.mxu0 0.0
        %1206 = vmatprep.subr.mxu0 0.0
        %1207 = vmatpush1.msra.mxu0 0.0
        %1208 = vmatprep.subr.mxu0 0.0
        %1209 = vmatpush1.msra.mxu0 0.0
        %1210 = vmatprep.subr.mxu0 0.0
        %1211 = vmatpush1.msra.mxu0 0.0
        %1212 = vmatprep.subr.mxu0 0.0
        %1213 = vmatpush1.msra.mxu0 0.0
        %1214 = vmatprep.subr.mxu0 0.0
        %1215 = vmatpush1.msra.mxu0 0.0
        %1216 = vmatprep.subr.mxu0 0.0
        %1217 = vmatpush1.msra.mxu0 0.0
        %1218 = vmatprep.subr.mxu0 0.0
        %1219 = vmatpush1.msra.mxu0 0.0
        %1220 = vmatprep.subr.mxu0 0.0
        %1221 = vmatpush1.msra.mxu0 0.0
        %1222 = vmatprep.subr.mxu0 0.0
        %1223 = vmatpush1.msra.mxu0 0.0
        %1224 = vmatprep.subr.mxu0 0.0
        %1225 = vmatpush1.msra.mxu0 0.0
        %1226 = vmatprep.subr.mxu0 0.0
        %1227 = vmatpush1.msra.mxu0 0.0
        %1228 = vmatprep.subr.mxu0 0.0
        %1229 = vmatpush1.msra.mxu0 0.0
        %1230 = vmatprep.subr.mxu0 0.0
        %1231 = vmatpush1.msra.mxu0 0.0
        %1232 = vmatprep.subr.mxu0 0.0
        %1233 = vmatpush1.msra.mxu0 0.0
        %1234 = vmatprep.subr.mxu0 0.0
        %1235 = vmatpush1.msra.mxu0 0.0
        %1236 = vmatprep.subr.mxu0 0.0
        %1237 = vmatpush1.msra.mxu0 0.0
        %1238 = vmatprep.subr.mxu0 0.0
        %1239 = vmatpush1.msra.mxu0 0.0
        %1240 = vmatprep.subr.mxu0 0.0
        %1241 = vmatpush1.msra.mxu0 0.0
        %1242 = vmatprep.subr.mxu0 0.0
        %1243 = vmatpush1.msra.mxu0 0.0
        %1244 = vmatprep.subr.mxu0 0.0
        %1245 = vmatpush1.msra.mxu0 0.0
        %1246 = vmatprep.subr.mxu0 0.0
        %1247 = vmatpush1.msra.mxu0 0.0
        %1248 = vmatprep.subr.mxu0 0.0
        %1249 = vmatpush1.msra.mxu0 0.0
        %1250 = vmatprep.subr.mxu0 0.0
        %1251 = vmatpush1.msra.mxu0 0.0
        %1252 = vmatprep.subr.mxu0 0.0
        %1253 = vmatpush1.msra.mxu0 0.0
        %1254 = vmatprep.subr.mxu0 0.0
        %1255 = vmatpush1.msra.mxu0 0.0
        %1256 = vmatprep.mubr.f32.mxu0 0.0
        %1257 = vmatmul.mubr.f32.gmra.mrb[0].mxu0 %v1190
        %v1258 = vpop.f32.mrb[0].mxu0
        %v1259 = vadd.f32 %v980, %v1258
        %v1260 = vpop.f32.mrb[0].mxu0
        %v1261 = vadd.f32 %v982, %v1260
        %1262 = vdwg.mxu0
        %1263 = vrot.lane.b32.xlu0 %v870, 16
        %v1264 = vpop.permute.xlu0 %1263
        %1265 = vrot.lane.b32.xlu0 %v871, 16
        %v1266 = vpop.permute.xlu0 %1265
        %1267 = vrot.lane.b32.xlu0 %v872, 16
        %v1268 = vpop.permute.xlu0 %1267
        %1269 = vrot.lane.b32.xlu0 %v873, 16
        %v1270 = vpop.permute.xlu0 %1269
        %1271 = vrot.lane.b32.xlu0 %v874, 16
        %v1272 = vpop.permute.xlu0 %1271
        %1273 = vrot.lane.b32.xlu0 %v875, 16
        %v1274 = vpop.permute.xlu0 %1273
        %v1275 = vsel %vm909, %v1264, %v1266
        %v1276 = vsel %vm909, %v1266, %v1268
        %v1277 = vsel %vm909, %v1270, %v1272
        %v1278 = vsel %vm909, %v1272, %v1274
        %v1284 = vsel %vm909, %v877, 0
        %1286 = vmatprep.subr.mxu0 %v1276
        %1287 = vmatpush1.msra.mxu0 %v1275
        %1288 = vmatprep.subr.mxu0 %v1278
        %1289 = vmatpush1.msra.mxu0 %v1277
        %1290 = vmatprep.subr.mxu0 0.0
        %1291 = vmatpush1.msra.mxu0 0.0
        %1292 = vmatprep.subr.mxu0 0.0
        %1293 = vmatpush1.msra.mxu0 0.0
        %1294 = vmatprep.subr.mxu0 0.0
        %1295 = vmatpush1.msra.mxu0 0.0
        %1296 = vmatprep.subr.mxu0 0.0
        %1297 = vmatpush1.msra.mxu0 0.0
        %1298 = vmatprep.subr.mxu0 0.0
        %1299 = vmatpush1.msra.mxu0 0.0
        %1300 = vmatprep.subr.mxu0 0.0
        %1301 = vmatpush1.msra.mxu0 0.0
        %1302 = vmatprep.subr.mxu0 0.0
        %1303 = vmatpush1.msra.mxu0 0.0
        %1304 = vmatprep.subr.mxu0 0.0
        %1305 = vmatpush1.msra.mxu0 0.0
        %1306 = vmatprep.subr.mxu0 0.0
        %1307 = vmatpush1.msra.mxu0 0.0
        %1308 = vmatprep.subr.mxu0 0.0
        %1309 = vmatpush1.msra.mxu0 0.0
        %1310 = vmatprep.subr.mxu0 0.0
        %1311 = vmatpush1.msra.mxu0 0.0
        %1312 = vmatprep.subr.mxu0 0.0
        %1313 = vmatpush1.msra.mxu0 0.0
        %1314 = vmatprep.subr.mxu0 0.0
        %1315 = vmatpush1.msra.mxu0 0.0
        %1316 = vmatprep.subr.mxu0 0.0
        %1317 = vmatpush1.msra.mxu0 0.0
        %1318 = vmatprep.subr.mxu0 0.0
        %1319 = vmatpush1.msra.mxu0 0.0
        %1320 = vmatprep.subr.mxu0 0.0
        %1321 = vmatpush1.msra.mxu0 0.0
        %1322 = vmatprep.subr.mxu0 0.0
        %1323 = vmatpush1.msra.mxu0 0.0
        %1324 = vmatprep.subr.mxu0 0.0
        %1325 = vmatpush1.msra.mxu0 0.0
        %1326 = vmatprep.subr.mxu0 0.0
        %1327 = vmatpush1.msra.mxu0 0.0
        %1328 = vmatprep.subr.mxu0 0.0
        %1329 = vmatpush1.msra.mxu0 0.0
        %1330 = vmatprep.subr.mxu0 0.0
        %1331 = vmatpush1.msra.mxu0 0.0
        %1332 = vmatprep.subr.mxu0 0.0
        %1333 = vmatpush1.msra.mxu0 0.0
        %1334 = vmatprep.subr.mxu0 0.0
        %1335 = vmatpush1.msra.mxu0 0.0
        %1336 = vmatprep.subr.mxu0 0.0
        %1337 = vmatpush1.msra.mxu0 0.0
        %1338 = vmatprep.subr.mxu0 0.0
        %1339 = vmatpush1.msra.mxu0 0.0
        %1340 = vmatprep.subr.mxu0 0.0
        %1341 = vmatpush1.msra.mxu0 0.0
        %1342 = vmatprep.subr.mxu0 0.0
        %1343 = vmatpush1.msra.mxu0 0.0
        %1344 = vmatprep.subr.mxu0 0.0
        %1345 = vmatpush1.msra.mxu0 0.0
        %1346 = vmatprep.subr.mxu0 0.0
        %1347 = vmatpush1.msra.mxu0 0.0
        %1348 = vmatprep.subr.mxu0 0.0
        %1349 = vmatpush1.msra.mxu0 0.0
        %1350 = vmatprep.mubr.f32.mxu0 0.0
        %1351 = vmatmul.mubr.f32.gmra.mrb[0].mxu0 %v1284
        %v1352 = vpop.f32.mrb[0].mxu0
        %v1353 = vadd.f32 %v1056, %v1352
        %v1354 = vpop.f32.mrb[0].mxu0
        %v1355 = vadd.f32 %v1058, %v1354
        %1356 = vdwg.mxu0
        %1357 = vrot.lane.b32.xlu0 %v870, 15
        %v1358 = vpop.permute.xlu0 %1357
        %1359 = vrot.lane.b32.xlu0 %v871, 15
        %v1360 = vpop.permute.xlu0 %1359
        %1361 = vrot.lane.b32.xlu0 %v872, 15
        %v1362 = vpop.permute.xlu0 %1361
        %1363 = vrot.lane.b32.xlu0 %v873, 15
        %v1364 = vpop.permute.xlu0 %1363
        %1365 = vrot.lane.b32.xlu0 %v874, 15
        %v1366 = vpop.permute.xlu0 %1365
        %1367 = vrot.lane.b32.xlu0 %v875, 15
        %v1368 = vpop.permute.xlu0 %1367
        %vm1369 = vcmask 121856
        %v1370 = vsel %vm1369, %v1358, %v1360
        %v1371 = vsel %vm1369, %v1360, %v1362
        %v1372 = vsel %vm1369, %v1364, %v1366
        %v1373 = vsel %vm1369, %v1366, %v1368
        %v1379 = vsel %vm909, %v879, 0
        %1381 = vmatprep.subr.mxu0 %v1371
        %1382 = vmatpush1.msra.mxu0 %v1370
        %1383 = vmatprep.subr.mxu0 %v1373
        %1384 = vmatpush1.msra.mxu0 %v1372
        %1385 = vmatprep.subr.mxu0 0.0
        %1386 = vmatpush1.msra.mxu0 0.0
        %1387 = vmatprep.subr.mxu0 0.0
        %1388 = vmatpush1.msra.mxu0 0.0
        %1389 = vmatprep.subr.mxu0 0.0
        %1390 = vmatpush1.msra.mxu0 0.0
        %1391 = vmatprep.subr.mxu0 0.0
        %1392 = vmatpush1.msra.mxu0 0.0
        %1393 = vmatprep.subr.mxu0 0.0
        %1394 = vmatpush1.msra.mxu0 0.0
        %1395 = vmatprep.subr.mxu0 0.0
        %1396 = vmatpush1.msra.mxu0 0.0
        %1397 = vmatprep.subr.mxu0 0.0
        %1398 = vmatpush1.msra.mxu0 0.0
        %1399 = vmatprep.subr.mxu0 0.0
        %1400 = vmatpush1.msra.mxu0 0.0
        %1401 = vmatprep.subr.mxu0 0.0
        %1402 = vmatpush1.msra.mxu0 0.0
        %1403 = vmatprep.subr.mxu0 0.0
        %1404 = vmatpush1.msra.mxu0 0.0
        %1405 = vmatprep.subr.mxu0 0.0
        %1406 = vmatpush1.msra.mxu0 0.0
        %1407 = vmatprep.subr.mxu0 0.0
        %1408 = vmatpush1.msra.mxu0 0.0
        %1409 = vmatprep.subr.mxu0 0.0
        %1410 = vmatpush1.msra.mxu0 0.0
        %1411 = vmatprep.subr.mxu0 0.0
        %1412 = vmatpush1.msra.mxu0 0.0
        %1413 = vmatprep.subr.mxu0 0.0
        %1414 = vmatpush1.msra.mxu0 0.0
        %1415 = vmatprep.subr.mxu0 0.0
        %1416 = vmatpush1.msra.mxu0 0.0
        %1417 = vmatprep.subr.mxu0 0.0
        %1418 = vmatpush1.msra.mxu0 0.0
        %1419 = vmatprep.subr.mxu0 0.0
        %1420 = vmatpush1.msra.mxu0 0.0
        %1421 = vmatprep.subr.mxu0 0.0
        %1422 = vmatpush1.msra.mxu0 0.0
        %1423 = vmatprep.subr.mxu0 0.0
        %1424 = vmatpush1.msra.mxu0 0.0
        %1425 = vmatprep.subr.mxu0 0.0
        %1426 = vmatpush1.msra.mxu0 0.0
        %1427 = vmatprep.subr.mxu0 0.0
        %1428 = vmatpush1.msra.mxu0 0.0
        %1429 = vmatprep.subr.mxu0 0.0
        %1430 = vmatpush1.msra.mxu0 0.0
        %1431 = vmatprep.subr.mxu0 0.0
        %1432 = vmatpush1.msra.mxu0 0.0
        %1433 = vmatprep.subr.mxu0 0.0
        %1434 = vmatpush1.msra.mxu0 0.0
        %1435 = vmatprep.subr.mxu0 0.0
        %1436 = vmatpush1.msra.mxu0 0.0
        %1437 = vmatprep.subr.mxu0 0.0
        %1438 = vmatpush1.msra.mxu0 0.0
        %1439 = vmatprep.subr.mxu0 0.0
        %1440 = vmatpush1.msra.mxu0 0.0
        %1441 = vmatprep.subr.mxu0 0.0
        %1442 = vmatpush1.msra.mxu0 0.0
        %1443 = vmatprep.subr.mxu0 0.0
        %1444 = vmatpush1.msra.mxu0 0.0
        %1445 = vmatprep.mubr.f32.mxu0 0.0
        %1446 = vmatmul.mubr.f32.gmra.mrb[0].mxu0 %v1379
        %v1447 = vpop.f32.mrb[0].mxu0
        %v1448 = vadd.f32 %v1165, %v1447
        %v1449 = vpop.f32.mrb[0].mxu0
        %v1450 = vadd.f32 %v1167, %v1449
        %1451 = vdwg.mxu0
        %s1452 = scalar_lea.vmem %s5, 48
        %v1453 = vld [vmem:[%s1452] sm:$0xff]
        %1454 = vrot.lane.b32.xlu0 %v1062, 113
        %v1455 = vpop.permute.xlu0 %1454
        %1456 = vrot.lane.b32.xlu0 %v1063, 113
        %v1457 = vpop.permute.xlu0 %1456
        %1458 = vrot.lane.b32.xlu0 %v1064, 113
        %v1459 = vpop.permute.xlu0 %1458
        %1460 = vrot.lane.b32.xlu0 %v1065, 113
        %v1461 = vpop.permute.xlu0 %1460
        %1462 = vrot.lane.b32.xlu0 %v1066, 113
        %v1463 = vpop.permute.xlu0 %1462
        %1464 = vrot.lane.b32.xlu0 %v1067, 113
        %v1465 = vpop.permute.xlu0 %1464
        %vm1466 = vcmask 924672
        %v1467 = vsel %vm1466, %v1455, %v1457
        %v1468 = vsel %vm1466, %v1457, %v1459
        %v1469 = vsel %vm1466, %v1461, %v1463
        %v1470 = vsel %vm1466, %v1463, %v1465
        %v1476 = vsel %vm909, %v1453, 0
        %1478 = vmatprep.subr.mxu0 %v1468
        %1479 = vmatpush1.msra.mxu0 %v1467
        %1480 = vmatprep.subr.mxu0 %v1470
        %1481 = vmatpush1.msra.mxu0 %v1469
        %1482 = vmatprep.subr.mxu0 0.0
        %1483 = vmatpush1.msra.mxu0 0.0
        %1484 = vmatprep.subr.mxu0 0.0
        %1485 = vmatpush1.msra.mxu0 0.0
        %1486 = vmatprep.subr.mxu0 0.0
        %1487 = vmatpush1.msra.mxu0 0.0
        %1488 = vmatprep.subr.mxu0 0.0
        %1489 = vmatpush1.msra.mxu0 0.0
        %1490 = vmatprep.subr.mxu0 0.0
        %1491 = vmatpush1.msra.mxu0 0.0
        %1492 = vmatprep.subr.mxu0 0.0
        %1493 = vmatpush1.msra.mxu0 0.0
        %1494 = vmatprep.subr.mxu0 0.0
        %1495 = vmatpush1.msra.mxu0 0.0
        %1496 = vmatprep.subr.mxu0 0.0
        %1497 = vmatpush1.msra.mxu0 0.0
        %1498 = vmatprep.subr.mxu0 0.0
        %1499 = vmatpush1.msra.mxu0 0.0
        %1500 = vmatprep.subr.mxu0 0.0
        %1501 = vmatpush1.msra.mxu0 0.0
        %1502 = vmatprep.subr.mxu0 0.0
        %1503 = vmatpush1.msra.mxu0 0.0
        %1504 = vmatprep.subr.mxu0 0.0
        %1505 = vmatpush1.msra.mxu0 0.0
        %1506 = vmatprep.subr.mxu0 0.0
        %1507 = vmatpush1.msra.mxu0 0.0
        %1508 = vmatprep.subr.mxu0 0.0
        %1509 = vmatpush1.msra.mxu0 0.0
        %1510 = vmatprep.subr.mxu0 0.0
        %1511 = vmatpush1.msra.mxu0 0.0
        %1512 = vmatprep.subr.mxu0 0.0
        %1513 = vmatpush1.msra.mxu0 0.0
        %1514 = vmatprep.subr.mxu0 0.0
        %1515 = vmatpush1.msra.mxu0 0.0
        %1516 = vmatprep.subr.mxu0 0.0
        %1517 = vmatpush1.msra.mxu0 0.0
        %1518 = vmatprep.subr.mxu0 0.0
        %1519 = vmatpush1.msra.mxu0 0.0
        %1520 = vmatprep.subr.mxu0 0.0
        %1521 = vmatpush1.msra.mxu0 0.0
        %1522 = vmatprep.subr.mxu0 0.0
        %1523 = vmatpush1.msra.mxu0 0.0
        %1524 = vmatprep.subr.mxu0 0.0
        %1525 = vmatpush1.msra.mxu0 0.0
        %1526 = vmatprep.subr.mxu0 0.0
        %1527 = vmatpush1.msra.mxu0 0.0
        %1528 = vmatprep.subr.mxu0 0.0
        %1529 = vmatpush1.msra.mxu0 0.0
        %1530 = vmatprep.subr.mxu0 0.0
        %1531 = vmatpush1.msra.mxu0 0.0
        %1532 = vmatprep.subr.mxu0 0.0
        %1533 = vmatpush1.msra.mxu0 0.0
        %1534 = vmatprep.subr.mxu0 0.0
        %1535 = vmatpush1.msra.mxu0 0.0
        %1536 = vmatprep.subr.mxu0 0.0
        %1537 = vmatpush1.msra.mxu0 0.0
        %1538 = vmatprep.subr.mxu0 0.0
        %1539 = vmatpush1.msra.mxu0 0.0
        %1540 = vmatprep.subr.mxu0 0.0
        %1541 = vmatpush1.msra.mxu0 0.0
        %1542 = vmatprep.mubr.f32.mxu0 0.0
        %1543 = vmatmul.mubr.f32.gmra.mrb[0].mxu0 %v1476
        %v1544 = vpop.f32.mrb[0].mxu0
        %v1545 = vadd.f32 0.0, %v1544
        %v1546 = vpop.f32.mrb[0].mxu0
        %v1547 = vadd.f32 0.0, %v1546
        %1548 = vdwg.mxu0
        %s1549 = scalar_lea.vmem %s5, 56
        %v1550 = vld [vmem:[%s1549] sm:$0xff]
        %1551 = vrot.lane.b32.xlu0 %v1062, 112
        %v1552 = vpop.permute.xlu0 %1551
        %1553 = vrot.lane.b32.xlu0 %v1063, 112
        %v1554 = vpop.permute.xlu0 %1553
        %1555 = vrot.lane.b32.xlu0 %v1064, 112
        %v1556 = vpop.permute.xlu0 %1555
        %1557 = vrot.lane.b32.xlu0 %v1065, 112
        %v1558 = vpop.permute.xlu0 %1557
        %1559 = vrot.lane.b32.xlu0 %v1066, 112
        %v1560 = vpop.permute.xlu0 %1559
        %1561 = vrot.lane.b32.xlu0 %v1067, 112
        %v1562 = vpop.permute.xlu0 %1561
        %vm1563 = vcmask 916480
        %v1564 = vsel %vm1563, %v1552, %v1554
        %v1565 = vsel %vm1563, %v1554, %v1556
        %v1566 = vsel %vm1563, %v1558, %v1560
        %v1567 = vsel %vm1563, %v1560, %v1562
        %v1573 = vsel %vm909, %v1550, 0
        %1575 = vmatprep.subr.mxu0 %v1565
        %1576 = vmatpush1.msra.mxu0 %v1564
        %1577 = vmatprep.subr.mxu0 %v1567
        %1578 = vmatpush1.msra.mxu0 %v1566
        %1579 = vmatprep.subr.mxu0 0.0
        %1580 = vmatpush1.msra.mxu0 0.0
        %1581 = vmatprep.subr.mxu0 0.0
        %1582 = vmatpush1.msra.mxu0 0.0
        %1583 = vmatprep.subr.mxu0 0.0
        %1584 = vmatpush1.msra.mxu0 0.0
        %1585 = vmatprep.subr.mxu0 0.0
        %1586 = vmatpush1.msra.mxu0 0.0
        %1587 = vmatprep.subr.mxu0 0.0
        %1588 = vmatpush1.msra.mxu0 0.0
        %1589 = vmatprep.subr.mxu0 0.0
        %1590 = vmatpush1.msra.mxu0 0.0
        %1591 = vmatprep.subr.mxu0 0.0
        %1592 = vmatpush1.msra.mxu0 0.0
        %1593 = vmatprep.subr.mxu0 0.0
        %1594 = vmatpush1.msra.mxu0 0.0
        %1595 = vmatprep.subr.mxu0 0.0
        %1596 = vmatpush1.msra.mxu0 0.0
        %1597 = vmatprep.subr.mxu0 0.0
        %1598 = vmatpush1.msra.mxu0 0.0
        %1599 = vmatprep.subr.mxu0 0.0
        %1600 = vmatpush1.msra.mxu0 0.0
        %1601 = vmatprep.subr.mxu0 0.0
        %1602 = vmatpush1.msra.mxu0 0.0
        %1603 = vmatprep.subr.mxu0 0.0
        %1604 = vmatpush1.msra.mxu0 0.0
        %1605 = vmatprep.subr.mxu0 0.0
        %1606 = vmatpush1.msra.mxu0 0.0
        %1607 = vmatprep.subr.mxu0 0.0
        %1608 = vmatpush1.msra.mxu0 0.0
        %1609 = vmatprep.subr.mxu0 0.0
        %1610 = vmatpush1.msra.mxu0 0.0
        %1611 = vmatprep.subr.mxu0 0.0
        %1612 = vmatpush1.msra.mxu0 0.0
        %1613 = vmatprep.subr.mxu0 0.0
        %1614 = vmatpush1.msra.mxu0 0.0
        %1615 = vmatprep.subr.mxu0 0.0
        %1616 = vmatpush1.msra.mxu0 0.0
        %1617 = vmatprep.subr.mxu0 0.0
        %1618 = vmatpush1.msra.mxu0 0.0
        %1619 = vmatprep.subr.mxu0 0.0
        %1620 = vmatpush1.msra.mxu0 0.0
        %1621 = vmatprep.subr.mxu0 0.0
        %1622 = vmatpush1.msra.mxu0 0.0
        %1623 = vmatprep.subr.mxu0 0.0
        %1624 = vmatpush1.msra.mxu0 0.0
        %1625 = vmatprep.subr.mxu0 0.0
        %1626 = vmatpush1.msra.mxu0 0.0
        %1627 = vmatprep.subr.mxu0 0.0
        %1628 = vmatpush1.msra.mxu0 0.0
        %1629 = vmatprep.subr.mxu0 0.0
        %1630 = vmatpush1.msra.mxu0 0.0
        %1631 = vmatprep.subr.mxu0 0.0
        %1632 = vmatpush1.msra.mxu0 0.0
        %1633 = vmatprep.subr.mxu0 0.0
        %1634 = vmatpush1.msra.mxu0 0.0
        %1635 = vmatprep.subr.mxu0 0.0
        %1636 = vmatpush1.msra.mxu0 0.0
        %1637 = vmatprep.subr.mxu0 0.0
        %1638 = vmatpush1.msra.mxu0 0.0
        %1639 = vmatprep.mubr.f32.mxu0 0.0
        %1640 = vmatmul.mubr.f32.gmra.mrb[0].mxu0 %v1573
        %v1641 = vpop.f32.mrb[0].mxu0
        %v1642 = vadd.f32 0.0, %v1641
        %v1643 = vpop.f32.mrb[0].mxu0
        %v1644 = vadd.f32 0.0, %v1643
        %1645 = vdwg.mxu0
        %s1646 = scalar_lea.vmem %s5, 64
        %v1647 = vld [vmem:[%s1646] sm:$0xff]
        %1648 = vrot.lane.b32.xlu0 %v1062, 111
        %v1649 = vpop.permute.xlu0 %1648
        %1650 = vrot.lane.b32.xlu0 %v1063, 111
        %v1651 = vpop.permute.xlu0 %1650
        %1652 = vrot.lane.b32.xlu0 %v1064, 111
        %v1653 = vpop.permute.xlu0 %1652
        %1654 = vrot.lane.b32.xlu0 %v1065, 111
        %v1655 = vpop.permute.xlu0 %1654
        %1656 = vrot.lane.b32.xlu0 %v1066, 111
        %v1657 = vpop.permute.xlu0 %1656
        %1658 = vrot.lane.b32.xlu0 %v1067, 111
        %v1659 = vpop.permute.xlu0 %1658
        %vm1660 = vcmask 908288
        %v1661 = vsel %vm1660, %v1649, %v1651
        %v1662 = vsel %vm1660, %v1651, %v1653
        %v1663 = vsel %vm1660, %v1655, %v1657
        %v1664 = vsel %vm1660, %v1657, %v1659
        %v1670 = vsel %vm909, %v1647, 0
        %1672 = vmatprep.subr.mxu0 %v1662
        %1673 = vmatpush1.msra.mxu0 %v1661
        %1674 = vmatprep.subr.mxu0 %v1664
        %1675 = vmatpush1.msra.mxu0 %v1663
        %1676 = vmatprep.subr.mxu0 0.0
        %1677 = vmatpush1.msra.mxu0 0.0
        %1678 = vmatprep.subr.mxu0 0.0
        %1679 = vmatpush1.msra.mxu0 0.0
        %1680 = vmatprep.subr.mxu0 0.0
        %1681 = vmatpush1.msra.mxu0 0.0
        %1682 = vmatprep.subr.mxu0 0.0
        %1683 = vmatpush1.msra.mxu0 0.0
        %1684 = vmatprep.subr.mxu0 0.0
        %1685 = vmatpush1.msra.mxu0 0.0
        %1686 = vmatprep.subr.mxu0 0.0
        %1687 = vmatpush1.msra.mxu0 0.0
        %1688 = vmatprep.subr.mxu0 0.0
        %1689 = vmatpush1.msra.mxu0 0.0
        %1690 = vmatprep.subr.mxu0 0.0
        %1691 = vmatpush1.msra.mxu0 0.0
        %1692 = vmatprep.subr.mxu0 0.0
        %1693 = vmatpush1.msra.mxu0 0.0
        %1694 = vmatprep.subr.mxu0 0.0
        %1695 = vmatpush1.msra.mxu0 0.0
        %1696 = vmatprep.subr.mxu0 0.0
        %1697 = vmatpush1.msra.mxu0 0.0
        %1698 = vmatprep.subr.mxu0 0.0
        %1699 = vmatpush1.msra.mxu0 0.0
        %1700 = vmatprep.subr.mxu0 0.0
        %1701 = vmatpush1.msra.mxu0 0.0
        %1702 = vmatprep.subr.mxu0 0.0
        %1703 = vmatpush1.msra.mxu0 0.0
        %1704 = vmatprep.subr.mxu0 0.0
        %1705 = vmatpush1.msra.mxu0 0.0
        %1706 = vmatprep.subr.mxu0 0.0
        %1707 = vmatpush1.msra.mxu0 0.0
        %1708 = vmatprep.subr.mxu0 0.0
        %1709 = vmatpush1.msra.mxu0 0.0
        %1710 = vmatprep.subr.mxu0 0.0
        %1711 = vmatpush1.msra.mxu0 0.0
        %1712 = vmatprep.subr.mxu0 0.0
        %1713 = vmatpush1.msra.mxu0 0.0
        %1714 = vmatprep.subr.mxu0 0.0
        %1715 = vmatpush1.msra.mxu0 0.0
        %1716 = vmatprep.subr.mxu0 0.0
        %1717 = vmatpush1.msra.mxu0 0.0
        %1718 = vmatprep.subr.mxu0 0.0
        %1719 = vmatpush1.msra.mxu0 0.0
        %1720 = vmatprep.subr.mxu0 0.0
        %1721 = vmatpush1.msra.mxu0 0.0
        %1722 = vmatprep.subr.mxu0 0.0
        %1723 = vmatpush1.msra.mxu0 0.0
        %1724 = vmatprep.subr.mxu0 0.0
        %1725 = vmatpush1.msra.mxu0 0.0
        %1726 = vmatprep.subr.mxu0 0.0
        %1727 = vmatpush1.msra.mxu0 0.0
        %1728 = vmatprep.subr.mxu0 0.0
        %1729 = vmatpush1.msra.mxu0 0.0
        %1730 = vmatprep.subr.mxu0 0.0
        %1731 = vmatpush1.msra.mxu0 0.0
        %1732 = vmatprep.subr.mxu0 0.0
        %1733 = vmatpush1.msra.mxu0 0.0
        %1734 = vmatprep.subr.mxu0 0.0
        %1735 = vmatpush1.msra.mxu0 0.0
        %1736 = vmatprep.mubr.f32.mxu0 0.0
        %1737 = vmatmul.mubr.f32.gmra.mrb[0].mxu0 %v1670
        %v1738 = vpop.f32.mrb[0].mxu0
        %v1739 = vadd.f32 0.0, %v1738
        %v1740 = vpop.f32.mrb[0].mxu0
        %v1741 = vadd.f32 0.0, %v1740
        %1742 = vdwg.mxu0
        %v1743 = vadd.f32 %v1259, %v1545
        %v1744 = vadd.f32 %v1261, %v1547
        %v1745 = vadd.f32 %v1353, %v1642
        %v1746 = vadd.f32 %v1355, %v1644
        %v1747 = vadd.f32 %v1448, %v1739
        %v1748 = vadd.f32 %v1450, %v1741
        %v1750 = vlaneseq
        %v1751 = vshrl.u32 %v1750, 7
        %v1752 = vsub.s32 0, %v1751
        %v1753 = vrot.slane %v360, %v1752
        %v1754 = vlaneseq
        %v1755 = vshrl.u32 %v1754, 7
        %v1756 = vsub.s32 1, %v1755
        %v1757 = vrot.slane %v360, %v1756
        %v1760 = vmul.f32 %v1753, %v1743
        %v1761 = vmul.f32 %v1757, %v1744
        %v1762 = vadd.f32 %v1745, %v1760
        %v1763 = vadd.f32 %v1746, %v1761
        %v1765 = vlaneseq
        %v1766 = vshrl.u32 %v1765, 7
        %v1767 = vsub.s32 0, %v1766
        %v1768 = vrot.slane %v362, %v1767
        %v1769 = vlaneseq
        %v1770 = vshrl.u32 %v1769, 7
        %v1771 = vsub.s32 1, %v1770
        %v1772 = vrot.slane %v362, %v1771
        %v1775 = vmul.f32 %v1768, %v1747
        %v1776 = vmul.f32 %v1772, %v1748
        %v1777 = vadd.f32 %v1762, %v1775
        %v1778 = vadd.f32 %v1763, %v1776
        %1780 = vset.pattern.permute.xlu0 0
        %1781 = vperm.xlu0 %1780, %v363
        %v1782 = vpop.permute.xlu0 %1781
        %v1784 = vadd.f32 %v1777, %v1782
        %v1785 = vadd.f32 %v1778, %v1782
        %v1786 = vmax.f32 %v1784, 0.0
        %v1787 = vmax.f32 %v1785, 0.0
        %1788 = vst [vmem:[%s349] sm:$0xff] %v1786
        %1789 = vst [vmem:[%s349 + $0x8] sm:$0xff] %v1787
        %s1790 = sand.u32 %s212, 1
        %s1791 = scalar_lea.sflag [#allocation5], %s1790
        %s1792 = sand.u32 %s212, 1
        %s1793 = smul.addr %s1792, 16
        %s1794 = scalar_lea.vmem [#allocation8], %s1793
        // Predicated region
        $region61: #{tpu_custom_call.1} parent=51 // pred_check
          %p1795 = pneg %p222
        $region62: #{tpu_custom_call.1} parent=51 // pred_check_branch
          %1797 = sbr.rel (%p1795) target = $region64
        $region63: #{tpu_custom_call.1} parent=51 // pred_region
          %s1799 = ssub.s32 256, 256
          %1800 = vsyncadd %s1791, %s1799
          %s1801 = smul.addr %s26, 2
          %s1802 = smul.addr %s1801, 128
          %s1803 = scalar_lea.hbm %s8, %s1802
          %s1805 = sshll.u32 %s1794, 4
          %s1806 = int_to_ptr.vmem [resolvable:$true] %s1805
          %1808 = dma.vmem_to_hbm [thread:$0]  %s1806, 256, %s1803, %s1791
        $region64: #{tpu_custom_call.1} parent=51 // pred_fallthru
          _
      $region52: #{tpu_custom_call.1} parent=5 // pred_fallthru
        _
      %p1809 = scmp.le.s32.totalorder 2, %s21
      // Predicated region
      $region65: #{tpu_custom_call.1} parent=5 // pred_check
        %p1810 = pneg %p1809
      $region66: #{tpu_custom_call.1} parent=5 // pred_check_branch
        %1812 = sbr.rel (%p1810) target = $region68
      $region67: #{tpu_custom_call.1} parent=5 // pred_region
        %s1813 = ssub.s32 %s21, 2
        // Predicated region
        $region69: #{tpu_custom_call.1} parent=67 // pred_check
          %p1814 = pneg %p228
        $region70: #{tpu_custom_call.1} parent=67 // pred_check_branch
          %1816 = sbr.rel (%p1814) target = $region72
        $region71: #{tpu_custom_call.1} parent=67 // pred_region
          %s1817 = sand.u32 %s213, 1
          %s1818 = scalar_lea.sflag [#allocation5], %s1817
          %s1819 = sand.u32 %s213, 1
          %s1820 = smul.addr %s1819, 16
          %s1821 = scalar_lea.vmem [#allocation8], %s1820
          %1822 = dma.done %s1818, 256
        $region72: #{tpu_custom_call.1} parent=67 // pred_fallthru
          _
      $region68: #{tpu_custom_call.1} parent=5 // pred_fallthru
        _
    $region6: #{tpu_custom_call.1} parent=1 // loop_footer
      %s25 = sadd.s32 1, %s21
    $region7: #{tpu_custom_call.1} parent=1 // loop_footer_branch
      %20 = sbr.rel target = $region3
    $region8: #{tpu_custom_call.1} parent=1 // loop_exit
      _
    %1823 = vsyncpa [#allocation4], 1
    %s1824 = scalar_lea.sflag [#allocation4], 1
    %1825 = vsyncpa %s1824, 1
    %1826 = vsyncpa [#allocation7], 1
    %1827 = vsyncpa [#allocation5], 1
    %s1828 = scalar_lea.sflag [#allocation5], 1
    %1829 = vsyncpa %s1828, 1

</llo_original>
